<compile_context>
chip_gen: v5e
topology: v5e:2x2
jax: 0.10.0
libtpu: 0.0.40
codegen_flags: <defaults>
</compile_context>

<pallas_src>
import functools

import numpy as np
import jax
import jax.numpy as jnp
from jax.experimental import pallas as pl
from jax.experimental.pallas import tpu as pltpu

# ----------------------------- small Llama config -----------------------------
HIDDEN = 64
N_HEADS = 4
N_KV_HEADS = 2
HEAD_DIM = HIDDEN // N_HEADS          # 16
INTERMEDIATE = 128
RMS_EPS = 1e-6
BATCH = 2
SEQ = 8
N_REP = N_HEADS // N_KV_HEADS
SCALING = HEAD_DIM ** -0.5
QKV_DIM = N_HEADS * HEAD_DIM + 2 * N_KV_HEADS * HEAD_DIM   # 128


# =========================== fused decoder kernel =============================


def _decoder_layer_kernel(x_ref, mask_ref, sel_ref, wqkv_ref, bqkv_ref,
                          wo_ref, wgu_ref, wd_ref, o_ref, *, eps, batch, seq,
                          n_heads, n_kv_heads, head_dim, inter):
    x = x_ref[...].astype(jnp.float32)                       # [B*S, D] residual

    # ---- input RMSNorm (layernorm weight folded into wqkv at prepare time) ----
    var = jnp.mean(x * x, axis=-1, keepdims=True)
    xn = (x * jax.lax.rsqrt(var + eps)).astype(jnp.bfloat16)

    # ---- fused per-position QKV affine map (down o rotary o up o C-mix):
    # ONE wide bf16 MXU dot over the block-diagonal-expanded activations.
    # sel is a precomputed 0/1 constant; no iota/compare/select on the hot path.
    xn_exp = jnp.concatenate([xn] * seq, axis=1) * sel_ref[...]          # [B*S, S*D]
    qkv = jnp.dot(xn_exp, wqkv_ref[...],
                  preferred_element_type=jnp.float32) + bqkv_ref[...]    # [B*S, 128]

    # ---- attention, batched over (batch, head) -------------------------------
    k_off = n_heads * head_dim
    v_off = k_off + n_kv_heads * head_dim
    n_rep = n_heads // n_kv_heads
    q_l, k_l, v_l = [], [], []
    for b in range(batch):
        rows = slice(b * seq, (b + 1) * seq)
        for h in range(n_heads):
            g = h // n_rep                                   # shared KV head
            q_l.append(qkv[rows, h * head_dim:(h + 1) * head_dim])
            k_l.append(qkv[rows, k_off + g * head_dim:k_off + (g + 1) * head_dim])
            v_l.append(qkv[rows, v_off + g * head_dim:v_off + (g + 1) * head_dim])
    q_s = jnp.stack(q_l, axis=0).astype(jnp.bfloat16)        # [B*H, S, hd]
    k_s = jnp.stack(k_l, axis=0).astype(jnp.bfloat16)        # [B*H, S, hd]
    v_s = jnp.stack(v_l, axis=0).astype(jnp.bfloat16)        # [B*H, S, hd]

    # scaling (head_dim**-0.5) is pre-folded into the q columns of wqkv/bqkv.
    scores = jax.lax.dot_general(q_s, k_s, (((2,), (2,)), ((0,), (0,))),
                                 preferred_element_type=jnp.float32)     # [B*H,S,S]
    scores = scores + mask_ref[...]
    scores = scores - jnp.max(scores, axis=-1, keepdims=True)
    probs = jnp.exp(scores)
    probs = probs * pl.reciprocal(jnp.sum(probs, axis=-1, keepdims=True),
                                  approx=True)
    ctx = jax.lax.dot_general(probs.astype(jnp.bfloat16), v_s,
                              (((2,), (1,)), ((0,), (0,))),
                              preferred_element_type=jnp.float32)        # [B*H,S,hd]

    attn = jnp.concatenate(
        [jnp.concatenate([ctx[b * n_heads + h] for h in range(n_heads)], axis=1)
         for b in range(batch)], axis=0)                                 # [B*S, H*hd]

    # ---- o_proj (no bias) + residual ----
    h1 = x + jnp.dot(attn.astype(jnp.bfloat16), wo_ref[...],
                     preferred_element_type=jnp.float32)

    # ---- post-attention RMSNorm (weight folded into wgu) + SwiGLU MLP + residual
    var2 = jnp.mean(h1 * h1, axis=-1, keepdims=True)
    h1n = (h1 * jax.lax.rsqrt(var2 + eps)).astype(jnp.bfloat16)
    gu = jnp.dot(h1n, wgu_ref[...], preferred_element_type=jnp.float32)  # [B*S, 2I]
    gate = gu[:, :inter]
    up = gu[:, inter:]
    act = (gate * jax.nn.sigmoid(gate)) * up                 # SiLU(gate) * up
    mlp = jnp.dot(act.astype(jnp.bfloat16), wd_ref[...],
                  preferred_element_type=jnp.float32)
    o_ref[...] = (h1 + mlp).astype(o_ref.dtype)


def llama_decoder_layer(prep, hidden_states, attention_mask):
    """Token hot path: one fused pallas_call over the whole decoder layer."""
    B, S, D = hidden_states.shape
    # Runtime shape must match the S/B baked into the folded weights.
    s_prep = prep['wqkv'].shape[0] // D
    b_prep = prep['bqkv'].shape[0] // s_prep
    if S != s_prep or B != b_prep:
        raise ValueError(f"prep built for (B,S)=({b_prep},{s_prep}), got ({B},{S})")

    x2d = hidden_states.reshape(B * S, D)
    # One [B*H, S, S] additive-mask slab, DMA'd once (no per-step copies).
    mask_bh = jnp.broadcast_to(attention_mask.reshape(B, 1, S, S),
                               (B, N_HEADS, S, S)).reshape(B * N_HEADS, S, S)

    kernel = functools.partial(
        _decoder_layer_kernel, eps=RMS_EPS, batch=B, seq=S,
        n_heads=N_HEADS, n_kv_heads=N_KV_HEADS, head_dim=HEAD_DIM,
        inter=INTERMEDIATE)

    # Batch is collapsed into rows (single grid step) -- best for single-TC
    # v5e/v6e.  On v7x, grid=(B,) with dimension_semantics=("parallel",) is an
    # alternative that shards the two batches across the two TensorCores.
    out = pl.pallas_call(
        kernel,
        out_shape=jax.ShapeDtypeStruct((B * S, D), hidden_states.dtype),
        grid=(1,),
        in_specs=[
            pl.BlockSpec((B * S, D), lambda i: (0, 0)),                  # x
            pl.BlockSpec((B * N_HEADS, S, S), lambda i: (0, 0, 0)),      # mask
            pl.BlockSpec((B * S, S * D), lambda i: (0, 0)),              # selector
            pl.BlockSpec((S * D, QKV_DIM), lambda i: (0, 0)),            # wqkv (bf16)
            pl.BlockSpec((B * S, QKV_DIM), lambda i: (0, 0)),            # bqkv (f32)
            pl.BlockSpec((D, D), lambda i: (0, 0)),                      # wo (bf16)
            pl.BlockSpec((D, 2 * INTERMEDIATE), lambda i: (0, 0)),       # gate||up
            pl.BlockSpec((INTERMEDIATE, D), lambda i: (0, 0)),           # down
        ],
        out_specs=pl.BlockSpec((B * S, D), lambda i: (0, 0)),
        compiler_params=pltpu.CompilerParams(
            dimension_semantics=("arbitrary",)),
    )(x2d, mask_bh, prep['sel'], prep['wqkv'], prep['bqkv'],
      prep['wo'], prep['wgu'], prep['wd'])
    return out.reshape(B, S, D)


# ======================= parameter init (deterministic) =======================


def init_params(key):
    ks = jax.random.split(key, 16)

    def w(k, shape, scale=0.05):
        return scale * jax.random.normal(k, shape, jnp.float32)

    p = {}
    # torch nn.Linear weights are [out, in]
    p['q_proj_w'] = w(ks[0], (N_HEADS * HEAD_DIM, HIDDEN))
    p['k_proj_w'] = w(ks[1], (N_KV_HEADS * HEAD_DIM, HIDDEN))
    p['v_proj_w'] = w(ks[2], (N_KV_HEADS * HEAD_DIM, HIDDEN))
    p['o_proj_w'] = w(ks[3], (HIDDEN, N_HEADS * HEAD_DIM))
    p['q_d_b'] = w(ks[4], (N_HEADS * HEAD_DIM // 2,), 0.01)
    p['q_u_b'] = w(ks[5], (N_HEADS * HEAD_DIM,), 0.01)
    p['k_d_b'] = w(ks[6], (N_KV_HEADS * HEAD_DIM // 2,), 0.01)
    p['k_u_b'] = w(ks[7], (N_KV_HEADS * HEAD_DIM,), 0.01)
    p['v_d_b'] = w(ks[8], (N_KV_HEADS * HEAD_DIM // 2,), 0.01)
    p['v_u_b'] = w(ks[9], (N_KV_HEADS * HEAD_DIM,), 0.01)
    p['gate_w'] = w(ks[10], (INTERMEDIATE, HIDDEN))
    p['up_w'] = w(ks[11], (INTERMEDIATE, HIDDEN))
    p['down_w'] = w(ks[12], (HIDDEN, INTERMEDIATE))
    p['input_ln_w'] = jnp.ones((HIDDEN,), jnp.float32)
    p['post_ln_w'] = jnp.ones((HIDDEN,), jnp.float32)

    # get_up_down_matrix(): SVD split of q/k/v projection weights (setup, numpy).
    def svd_split(W):
        Wn = np.asarray(W, np.float32)
        U, S, Vh = np.linalg.svd(Wn, full_matrices=False)
        r = Wn.shape[0] // 2
        down = (np.diag(S[:r]) @ Vh[:r, :]).astype(np.float32)   # [r, in]
        up = U[:, :r].astype(np.float32)                         # [out, r]
        return jnp.asarray(down), jnp.asarray(up)

    p['q_d_w'], p['q_u_w'] = svd_split(p['q_proj_w'])
    p['k_d_w'], p['k_u_w'] = svd_split(p['k_proj_w'])
    p['v_d_w'], p['v_u_w'] = svd_split(p['v_proj_w'])

    # get_up_cb_matrix(): SVD of up-projection weights -> B (=Vh), C (=U).
    def svd_cb(W):
        Wn = np.asarray(W, np.float32)
        U, _, Vh = np.linalg.svd(Wn, full_matrices=False)
        return jnp.asarray(Vh.astype(np.float32)), jnp.asarray(U.astype(np.float32))

    p['B_q'], p['C_q'] = svd_cb(p['q_u_w'])
    p['B_k'], p['C_k'] = svd_cb(p['k_u_w'])
    return p


# =========================== HLA rotary operator ==============================


def build_rotary_operator(Bmat, num_heads, cos_matrix):
    """Per-position operator M[s] = sum_n Bb[n]^T cos16[s,n] Bb[n].

    Depends only on parameters + position embeddings (setup / glue); matches
    apply_rotary_pos_emb_hla_fast.parallel_transform (incl. float16 cast).
    """
    head_dim_half = (HEAD_DIM // 2) // 2
    num_blocks = num_heads * head_dim_half
    r = Bmat.shape[1]
    Bb = Bmat.reshape(num_blocks, 2, r)
    S = cos_matrix.shape[0]
    cos16 = cos_matrix[:, :head_dim_half].astype(jnp.float16).astype(jnp.float32)
    cosE = jnp.broadcast_to(cos16[:, None],
                            (S, num_heads, head_dim_half, 2, 2)
                            ).reshape(S, num_blocks, 2, 2)
    M = jnp.einsum('nji,snjk,nkl->sil', Bb, cosE, Bb)
    return M.astype(jnp.float32)


# ===================== setup-time weight folding (one-off) ====================


def _blockdiag(mats):
    rows = sum(m.shape[0] for m in mats)
    cols = sum(m.shape[1] for m in mats)
    out = jnp.zeros((rows, cols), jnp.float32)
    r0 = c0 = 0
    for m in mats:
        out = out.at[r0:r0 + m.shape[0], c0:c0 + m.shape[1]].set(m)
        r0 += m.shape[0]
        c0 += m.shape[1]
    return out


def prepare_decoder(params, cos_size_matrix, batch_size):
    """Parameter/position-only preprocessing (hoisted off the token hot path).

    Folds: fused down-proj, HLA per-position rotary operator, fused up-proj,
    C-mix, the input-RMSNorm weight and the attention scaling into one
    per-position affine map; folds the post-attention RMSNorm weight into the
    concatenated gate||up weight; precomputes the block-diagonal expansion
    selector; casts all matmul weights to bf16.
    """
    p = params
    S = cos_size_matrix.shape[0]
    d_q = N_HEADS * HEAD_DIM          # 64
    d_k = N_KV_HEADS * HEAD_DIM       # 32
    d_v = d_k

    M_q = build_rotary_operator(p['B_q'], N_HEADS, cos_size_matrix)      # [S,32,32]
    M_k = build_rotary_operator(p['B_k'], N_KV_HEADS, cos_size_matrix)   # [S,16,16]

    # fused down-projection  xn -> [q_h | k_h | v_h]
    W_d = jnp.concatenate([p['q_d_w'].T, p['k_d_w'].T, p['v_d_w'].T], axis=1)  # [64,64]
    b_d = jnp.concatenate([p['q_d_b'], p['k_d_b'], p['v_d_b']])                # [64]

    # fused up-projection (block diagonal) + biases
    W_u = _blockdiag([p['q_u_w'].T, p['k_u_w'].T, p['v_u_w'].T])         # [64,128]
    b_u = jnp.concatenate([p['q_u_b'], p['k_u_b'], p['v_u_b']])          # [128]

    # C-mix (low-rank halves of q/k replaced by x @ C) expressed as a matrix
    def mix_matrix(C, d):
        r = C.shape[1]
        eye_tail = jnp.zeros((d, d - r), jnp.float32).at[r:, :].set(
            jnp.eye(d - r, dtype=jnp.float32))
        return jnp.concatenate([C, eye_tail], axis=1)                    # [d, d]

    T = _blockdiag([mix_matrix(p['C_q'], d_q),
                    mix_matrix(p['C_k'], d_k),
                    jnp.eye(d_v, dtype=jnp.float32)])                    # [128,128]
    W_ut = W_u @ T                                                       # [64,128]
    b_ut = b_u @ T                                                       # [128]

    eye_v = jnp.eye(d_v // 2, dtype=jnp.float32)                         # v not rotated
    M_comb = jnp.stack([_blockdiag([M_q[s], M_k[s], eye_v])
                        for s in range(S)])                              # [S,64,64]

    # per-position fold:  qkv[s] = xn @ (W_d M[s] W_ut) + (b_d M[s] W_ut + b_ut)
    W_full = jnp.einsum('dr,srt,tn->sdn', W_d, M_comb, W_ut)             # [S,64,128]
    b_full = jnp.einsum('r,srt,tn->sn', b_d, M_comb, W_ut) + b_ut        # [S,128]

    # fold diag(input_layernorm) into the rows of the per-position map
    W_full = W_full * p['input_ln_w'][None, :, None]
    # fold attention scaling (head_dim**-0.5) into q columns + q bias
    W_full = W_full.at[:, :, :d_q].multiply(SCALING)
    b_full = b_full.at[:, :d_q].multiply(SCALING)

    # precomputed 0/1 selector for the block-diagonal activation expansion
    sel = np.zeros((batch_size * S, S * HIDDEN), np.float32)
    for b in range(batch_size):
        for s in range(S):
            sel[b * S + s, s * HIDDEN:(s + 1) * HIDDEN] = 1.0

    # MLP gate||up with diag(post_attention_layernorm) folded in
    wgu = jnp.concatenate([p['gate_w'].T, p['up_w'].T], axis=1) * p['post_ln_w'][:, None]

    return {
        'wqkv': W_full.reshape(S * HIDDEN, d_q + 2 * d_k).astype(jnp.bfloat16),
        'bqkv': jnp.tile(b_full, (batch_size, 1)),                       # [B*S,128] f32
        'sel': jnp.asarray(sel, jnp.bfloat16),                           # [B*S, S*D]
        'wo': p['o_proj_w'].T.astype(jnp.bfloat16),                      # [64,64]
        'wgu': wgu.astype(jnp.bfloat16),                                 # [64,256]
        'wd': p['down_w'].T.astype(jnp.bfloat16),                        # [128,64]
    }


# ============================ pure-JAX reference ==============================


def reference_decoder_layer(params, hidden_states, attention_mask, cos):
    p = params
    B, S, D = hidden_states.shape

    def rms(x, w):
        v = jnp.mean(x.astype(jnp.float32) ** 2, -1, keepdims=True)
        return w * (x * jax.lax.rsqrt(v + RMS_EPS))

    residual = hidden_states
    x = rms(hidden_states, p['input_ln_w'])
    q_h = x @ p['q_d_w'].T + p['q_d_b']
    k_h = x @ p['k_d_w'].T + p['k_d_b']
    v_h = x @ p['v_d_w'].T + p['v_d_b']
    M_q = build_rotary_operator(p['B_q'], N_HEADS, cos)
    M_k = build_rotary_operator(p['B_k'], N_KV_HEADS, cos)
    q_rot = jnp.einsum('bsd,sdj->bsj', q_h, M_q)
    k_rot = jnp.einsum('bsd,sdj->bsj', k_h, M_k)
    q_up = q_rot @ p['q_u_w'].T + p['q_u_b']
    k_up = k_rot @ p['k_u_w'].T + p['k_u_b']
    v_up = v_h @ p['v_u_w'].T + p['v_u_b']
    q_c = q_up @ p['C_q']
    k_c = k_up @ p['C_k']
    q_full = jnp.concatenate([q_c, q_up[..., q_c.shape[-1]:]], -1)
    k_full = jnp.concatenate([k_c, k_up[..., k_c.shape[-1]:]], -1)
    q4 = q_full.reshape(B, S, N_HEADS, HEAD_DIM).transpose(0, 2, 1, 3)
    k4 = k_full.reshape(B, S, N_KV_HEADS, HEAD_DIM).transpose(0, 2, 1, 3)
    v4 = v_up.reshape(B, S, N_KV_HEADS, HEAD_DIM).transpose(0, 2, 1, 3)
    k4 = jnp.repeat(k4, N_REP, axis=1)
    v4 = jnp.repeat(v4, N_REP, axis=1)
    s = jnp.einsum('bhqd,bhkd->bhqk', q4, k4) * SCALING + attention_mask
    pattn = jax.nn.softmax(s.astype(jnp.float32), -1).astype(q4.dtype)
    o = jnp.einsum('bhqk,bhkd->bhqd', pattn, v4).transpose(0, 2, 1, 3).reshape(B, S, -1)
    attn_out = o @ p['o_proj_w'].T
    hidden = residual + attn_out
    residual = hidden
    xn = rms(hidden, p['post_ln_w'])
    g = xn @ p['gate_w'].T
    u = xn @ p['up_w'].T
    mlp = (jax.nn.silu(g) * u) @ p['down_w'].T
    return residual + mlp


# ==================================== main ====================================

if __name__ == "__main__":
    key = jax.random.PRNGKey(0)
    kp, kx = jax.random.split(key)
    params = init_params(kp)

    hidden_states = jax.random.normal(kx, (BATCH, SEQ, HIDDEN), jnp.float32)

    # causal additive attention mask [B, 1, S, S]
    neg = jnp.finfo(jnp.float32).min
    causal = jnp.triu(jnp.full((SEQ, SEQ), neg, jnp.float32), k=1)
    attention_mask = jnp.broadcast_to(causal, (BATCH, 1, SEQ, SEQ))

    # position_embeddings: cos_size_matrix of per-pair 2x2 rotation matrices
    hdh = (HEAD_DIM // 2) // 2
    pos = jnp.arange(SEQ, dtype=jnp.float32)[:, None]
    freqs = (1.0 / (10000.0 ** (jnp.arange(hdh, dtype=jnp.float32) / hdh)))[None, :]
    ang = pos * freqs                                           # [S, hdh]
    c, s = jnp.cos(ang), jnp.sin(ang)
    cos_size_matrix = jnp.stack(
        [jnp.stack([c, -s], -1), jnp.stack([s, c], -1)], -2)    # [S, hdh, 2, 2]

    # one-off setup (parameter / position-embedding preprocessing)
    prep = prepare_decoder(params, cos_size_matrix, BATCH)

    # fused Pallas forward
    out = jax.jit(llama_decoder_layer)(prep, hidden_states, attention_mask)
    out = jax.block_until_ready(out)

    ref = reference_decoder_layer(params, hidden_states, attention_mask, cos_size_matrix)
    if not jnp.allclose(out, ref, atol=3e-2, rtol=3e-2):
        raise AssertionError("Pallas output does not match pure-JAX reference")

    print("KERNEL_OK")
</pallas_src>

<mosaic_0001>
module attributes {stable_mosaic.version = 11 : i64} {
  func.func @_decoder_layer_kernel(%arg0: i32, %arg1: memref<16x64xf32, #tpu.memory_space<vmem>>, %arg2: memref<8x8x8xf32, #tpu.memory_space<vmem>>, %arg3: memref<16x512xbf16, #tpu.memory_space<vmem>>, %arg4: memref<512x128xbf16, #tpu.memory_space<vmem>>, %arg5: memref<16x128xf32, #tpu.memory_space<vmem>>, %arg6: memref<64x64xbf16, #tpu.memory_space<vmem>>, %arg7: memref<64x256xbf16, #tpu.memory_space<vmem>>, %arg8: memref<128x64xbf16, #tpu.memory_space<vmem>>, %arg9: memref<16x64xf32, #tpu.memory_space<vmem>>) attributes {dimension_semantics = [#tpu.dimension_semantics<arbitrary>], iteration_bounds = array<i64: 1>, scalar_prefetch = 0 : i64, scratch_operands = 0 : i64, tpu.core_type = #tpu.core_type<tc>, window_params = [{pipeline_mode = #tpu.pipeline_mode<synchronous>, transform_indices = @transform_0, window_bounds = array<i64: 16, 64>}, {pipeline_mode = #tpu.pipeline_mode<synchronous>, transform_indices = @transform_1, window_bounds = array<i64: 8, 8, 8>}, {pipeline_mode = #tpu.pipeline_mode<synchronous>, transform_indices = @transform_2, window_bounds = array<i64: 16, 512>}, {pipeline_mode = #tpu.pipeline_mode<synchronous>, transform_indices = @transform_3, window_bounds = array<i64: 512, 128>}, {pipeline_mode = #tpu.pipeline_mode<synchronous>, transform_indices = @transform_4, window_bounds = array<i64: 16, 128>}, {pipeline_mode = #tpu.pipeline_mode<synchronous>, transform_indices = @transform_5, window_bounds = array<i64: 64, 64>}, {pipeline_mode = #tpu.pipeline_mode<synchronous>, transform_indices = @transform_6, window_bounds = array<i64: 64, 256>}, {pipeline_mode = #tpu.pipeline_mode<synchronous>, transform_indices = @transform_7, window_bounds = array<i64: 128, 64>}, {pipeline_mode = #tpu.pipeline_mode<synchronous>, transform_indices = @transform_8, window_bounds = array<i64: 16, 64>}]} {
    %c0 = arith.constant 0 : index
    %c0_0 = arith.constant 0 : index
    %0 = vector.load %arg1[%c0, %c0_0] : memref<16x64xf32, #tpu.memory_space<vmem>>, vector<16x64xf32>
    %1 = arith.mulf %0, %0 : vector<16x64xf32>
    %cst = arith.constant dense<0.000000e+00> : vector<16xf32>
    %2 = vector.multi_reduction <add>, %1, %cst [1] : vector<16x64xf32> to vector<16xf32>
    %3 = vector.shape_cast %2 : vector<16xf32> to vector<16x1xf32>
    %cst_1 = arith.constant 6.400000e+01 : f32
    %4 = vector.broadcast %cst_1 : f32 to vector<16x1xf32>
    %5 = arith.divf %3, %4 : vector<16x1xf32>
    %cst_2 = arith.constant 9.99999997E-7 : f32
    %6 = vector.broadcast %cst_2 : f32 to vector<16x1xf32>
    %7 = arith.addf %5, %6 : vector<16x1xf32>
    %8 = math.rsqrt %7 : vector<16x1xf32>
    %9 = vector.broadcast %8 : vector<16x1xf32> to vector<16x64xf32>
    %10 = arith.mulf %0, %9 : vector<16x64xf32>
    %11 = arith.truncf %10 : vector<16x64xf32> to vector<16x64xbf16>
    %12 = tpu.concatenate %11, %11, %11, %11, %11, %11, %11, %11 in 1 : vector<16x64xbf16>, vector<16x64xbf16>, vector<16x64xbf16>, vector<16x64xbf16>, vector<16x64xbf16>, vector<16x64xbf16>, vector<16x64xbf16>, vector<16x64xbf16> -> vector<16x512xbf16>
    %c0_3 = arith.constant 0 : index
    %c0_4 = arith.constant 0 : index
    %13 = vector.load %arg3[%c0_3, %c0_4] : memref<16x512xbf16, #tpu.memory_space<vmem>>, vector<16x512xbf16>
    %14 = arith.mulf %12, %13 : vector<16x512xbf16>
    %c0_5 = arith.constant 0 : index
    %c0_6 = arith.constant 0 : index
    %15 = vector.load %arg4[%c0_5, %c0_6] : memref<512x128xbf16, #tpu.memory_space<vmem>>, vector<512x128xbf16>
    %cst_7 = arith.constant dense<0.000000e+00> : vector<16x128xf32>
    %16 = tpu.matmul %14, %15, %cst_7 {dimension_numbers = #tpu.dot_dimension_numbers<[1], [0], [0], [1], [0, 0, 1, 1], [], []>} : vector<16x512xbf16>, vector<512x128xbf16>, vector<16x128xf32> -> vector<16x128xf32>
    %c0_8 = arith.constant 0 : index
    %c0_9 = arith.constant 0 : index
    %17 = vector.load %arg5[%c0_8, %c0_9] : memref<16x128xf32, #tpu.memory_space<vmem>>, vector<16x128xf32>
    %18 = arith.addf %16, %17 : vector<16x128xf32>
    %19 = vector.extract_strided_slice %18 {offsets = [0, 0], sizes = [8, 16], strides = [1, 1]} : vector<16x128xf32> to vector<8x16xf32>
    %20 = vector.extract_strided_slice %18 {offsets = [0, 64], sizes = [8, 16], strides = [1, 1]} : vector<16x128xf32> to vector<8x16xf32>
    %21 = vector.extract_strided_slice %18 {offsets = [0, 96], sizes = [8, 16], strides = [1, 1]} : vector<16x128xf32> to vector<8x16xf32>
    %22 = vector.extract_strided_slice %18 {offsets = [0, 16], sizes = [8, 16], strides = [1, 1]} : vector<16x128xf32> to vector<8x16xf32>
    %23 = vector.extract_strided_slice %18 {offsets = [0, 64], sizes = [8, 16], strides = [1, 1]} : vector<16x128xf32> to vector<8x16xf32>
    %24 = vector.extract_strided_slice %18 {offsets = [0, 96], sizes = [8, 16], strides = [1, 1]} : vector<16x128xf32> to vector<8x16xf32>
    %25 = vector.extract_strided_slice %18 {offsets = [0, 32], sizes = [8, 16], strides = [1, 1]} : vector<16x128xf32> to vector<8x16xf32>
    %26 = vector.extract_strided_slice %18 {offsets = [0, 80], sizes = [8, 16], strides = [1, 1]} : vector<16x128xf32> to vector<8x16xf32>
    %27 = vector.extract_strided_slice %18 {offsets = [0, 112], sizes = [8, 16], strides = [1, 1]} : vector<16x128xf32> to vector<8x16xf32>
    %28 = vector.extract_strided_slice %18 {offsets = [0, 48], sizes = [8, 16], strides = [1, 1]} : vector<16x128xf32> to vector<8x16xf32>
    %29 = vector.extract_strided_slice %18 {offsets = [0, 80], sizes = [8, 16], strides = [1, 1]} : vector<16x128xf32> to vector<8x16xf32>
    %30 = vector.extract_strided_slice %18 {offsets = [0, 112], sizes = [8, 16], strides = [1, 1]} : vector<16x128xf32> to vector<8x16xf32>
    %31 = vector.extract_strided_slice %18 {offsets = [8, 0], sizes = [8, 16], strides = [1, 1]} : vector<16x128xf32> to vector<8x16xf32>
    %32 = vector.extract_strided_slice %18 {offsets = [8, 64], sizes = [8, 16], strides = [1, 1]} : vector<16x128xf32> to vector<8x16xf32>
    %33 = vector.extract_strided_slice %18 {offsets = [8, 96], sizes = [8, 16], strides = [1, 1]} : vector<16x128xf32> to vector<8x16xf32>
    %34 = vector.extract_strided_slice %18 {offsets = [8, 16], sizes = [8, 16], strides = [1, 1]} : vector<16x128xf32> to vector<8x16xf32>
    %35 = vector.extract_strided_slice %18 {offsets = [8, 64], sizes = [8, 16], strides = [1, 1]} : vector<16x128xf32> to vector<8x16xf32>
    %36 = vector.extract_strided_slice %18 {offsets = [8, 96], sizes = [8, 16], strides = [1, 1]} : vector<16x128xf32> to vector<8x16xf32>
    %37 = vector.extract_strided_slice %18 {offsets = [8, 32], sizes = [8, 16], strides = [1, 1]} : vector<16x128xf32> to vector<8x16xf32>
    %38 = vector.extract_strided_slice %18 {offsets = [8, 80], sizes = [8, 16], strides = [1, 1]} : vector<16x128xf32> to vector<8x16xf32>
    %39 = vector.extract_strided_slice %18 {offsets = [8, 112], sizes = [8, 16], strides = [1, 1]} : vector<16x128xf32> to vector<8x16xf32>
    %40 = vector.extract_strided_slice %18 {offsets = [8, 48], sizes = [8, 16], strides = [1, 1]} : vector<16x128xf32> to vector<8x16xf32>
    %41 = vector.extract_strided_slice %18 {offsets = [8, 80], sizes = [8, 16], strides = [1, 1]} : vector<16x128xf32> to vector<8x16xf32>
    %42 = vector.extract_strided_slice %18 {offsets = [8, 112], sizes = [8, 16], strides = [1, 1]} : vector<16x128xf32> to vector<8x16xf32>
    %43 = vector.shape_cast %19 : vector<8x16xf32> to vector<1x8x16xf32>
    %44 = vector.shape_cast %22 : vector<8x16xf32> to vector<1x8x16xf32>
    %45 = vector.shape_cast %25 : vector<8x16xf32> to vector<1x8x16xf32>
    %46 = vector.shape_cast %28 : vector<8x16xf32> to vector<1x8x16xf32>
    %47 = vector.shape_cast %31 : vector<8x16xf32> to vector<1x8x16xf32>
    %48 = vector.shape_cast %34 : vector<8x16xf32> to vector<1x8x16xf32>
    %49 = vector.shape_cast %37 : vector<8x16xf32> to vector<1x8x16xf32>
    %50 = vector.shape_cast %40 : vector<8x16xf32> to vector<1x8x16xf32>
    %51 = tpu.concatenate %43, %44, %45, %46, %47, %48, %49, %50 in 0 : vector<1x8x16xf32>, vector<1x8x16xf32>, vector<1x8x16xf32>, vector<1x8x16xf32>, vector<1x8x16xf32>, vector<1x8x16xf32>, vector<1x8x16xf32>, vector<1x8x16xf32> -> vector<8x8x16xf32>
    %52 = arith.truncf %51 : vector<8x8x16xf32> to vector<8x8x16xbf16>
    %53 = vector.shape_cast %20 : vector<8x16xf32> to vector<1x8x16xf32>
    %54 = vector.shape_cast %23 : vector<8x16xf32> to vector<1x8x16xf32>
    %55 = vector.shape_cast %26 : vector<8x16xf32> to vector<1x8x16xf32>
    %56 = vector.shape_cast %29 : vector<8x16xf32> to vector<1x8x16xf32>
    %57 = vector.shape_cast %32 : vector<8x16xf32> to vector<1x8x16xf32>
    %58 = vector.shape_cast %35 : vector<8x16xf32> to vector<1x8x16xf32>
    %59 = vector.shape_cast %38 : vector<8x16xf32> to vector<1x8x16xf32>
    %60 = vector.shape_cast %41 : vector<8x16xf32> to vector<1x8x16xf32>
    %61 = tpu.concatenate %53, %54, %55, %56, %57, %58, %59, %60 in 0 : vector<1x8x16xf32>, vector<1x8x16xf32>, vector<1x8x16xf32>, vector<1x8x16xf32>, vector<1x8x16xf32>, vector<1x8x16xf32>, vector<1x8x16xf32>, vector<1x8x16xf32> -> vector<8x8x16xf32>
    %62 = arith.truncf %61 : vector<8x8x16xf32> to vector<8x8x16xbf16>
    %63 = vector.shape_cast %21 : vector<8x16xf32> to vector<1x8x16xf32>
    %64 = vector.shape_cast %24 : vector<8x16xf32> to vector<1x8x16xf32>
    %65 = vector.shape_cast %27 : vector<8x16xf32> to vector<1x8x16xf32>
    %66 = vector.shape_cast %30 : vector<8x16xf32> to vector<1x8x16xf32>
    %67 = vector.shape_cast %33 : vector<8x16xf32> to vector<1x8x16xf32>
    %68 = vector.shape_cast %36 : vector<8x16xf32> to vector<1x8x16xf32>
    %69 = vector.shape_cast %39 : vector<8x16xf32> to vector<1x8x16xf32>
    %70 = vector.shape_cast %42 : vector<8x16xf32> to vector<1x8x16xf32>
    %71 = tpu.concatenate %63, %64, %65, %66, %67, %68, %69, %70 in 0 : vector<1x8x16xf32>, vector<1x8x16xf32>, vector<1x8x16xf32>, vector<1x8x16xf32>, vector<1x8x16xf32>, vector<1x8x16xf32>, vector<1x8x16xf32>, vector<1x8x16xf32> -> vector<8x8x16xf32>
    %72 = arith.truncf %71 : vector<8x8x16xf32> to vector<8x8x16xbf16>
    %cst_10 = arith.constant dense<0.000000e+00> : vector<8x8x8xf32>
    %73 = tpu.matmul %52, %62, %cst_10 {dimension_numbers = #tpu.dot_dimension_numbers<[2], [2], [1], [1], [0, 0, 0, 1, 1, 1], [0], [0]>} : vector<8x8x16xbf16>, vector<8x8x16xbf16>, vector<8x8x8xf32> -> vector<8x8x8xf32>
    %c0_11 = arith.constant 0 : index
    %c0_12 = arith.constant 0 : index
    %c0_13 = arith.constant 0 : index
    %74 = vector.load %arg2[%c0_11, %c0_12, %c0_13] : memref<8x8x8xf32, #tpu.memory_space<vmem>>, vector<8x8x8xf32>
    %75 = arith.addf %73, %74 : vector<8x8x8xf32>
    %cst_14 = arith.constant dense<0xFF800000> : vector<8x8xf32>
    %76 = vector.multi_reduction <maximumf>, %75, %cst_14 [2] : vector<8x8x8xf32> to vector<8x8xf32>
    %77 = vector.shape_cast %76 : vector<8x8xf32> to vector<8x8x1xf32>
    %78 = vector.broadcast %77 : vector<8x8x1xf32> to vector<8x8x8xf32>
    %79 = arith.subf %75, %78 : vector<8x8x8xf32>
    %80 = math.exp %79 : vector<8x8x8xf32>
    %cst_15 = arith.constant dense<0.000000e+00> : vector<8x8xf32>
    %81 = vector.multi_reduction <add>, %80, %cst_15 [2] : vector<8x8x8xf32> to vector<8x8xf32>
    %82 = vector.shape_cast %81 : vector<8x8xf32> to vector<8x8x1xf32>
    %83 = tpu.reciprocal %82 {approx = true} : vector<8x8x1xf32> -> vector<8x8x1xf32>
    %84 = vector.broadcast %83 : vector<8x8x1xf32> to vector<8x8x8xf32>
    %85 = arith.mulf %80, %84 : vector<8x8x8xf32>
    %86 = arith.truncf %85 : vector<8x8x8xf32> to vector<8x8x8xbf16>
    %cst_16 = arith.constant dense<0.000000e+00> : vector<8x8x16xf32>
    %87 = tpu.matmul %86, %72, %cst_16 {dimension_numbers = #tpu.dot_dimension_numbers<[2], [1], [1], [2], [0, 0, 0, 1, 1, 2], [0], [0]>} : vector<8x8x8xbf16>, vector<8x8x16xbf16>, vector<8x8x16xf32> -> vector<8x8x16xf32>
    %88 = vector.extract_strided_slice %87 {offsets = [0, 0, 0], sizes = [1, 8, 16], strides = [1, 1, 1]} : vector<8x8x16xf32> to vector<1x8x16xf32>
    %89 = vector.shape_cast %88 : vector<1x8x16xf32> to vector<8x16xf32>
    %90 = vector.extract_strided_slice %87 {offsets = [1, 0, 0], sizes = [1, 8, 16], strides = [1, 1, 1]} : vector<8x8x16xf32> to vector<1x8x16xf32>
    %91 = vector.shape_cast %90 : vector<1x8x16xf32> to vector<8x16xf32>
    %92 = vector.extract_strided_slice %87 {offsets = [2, 0, 0], sizes = [1, 8, 16], strides = [1, 1, 1]} : vector<8x8x16xf32> to vector<1x8x16xf32>
    %93 = vector.shape_cast %92 : vector<1x8x16xf32> to vector<8x16xf32>
    %94 = vector.extract_strided_slice %87 {offsets = [3, 0, 0], sizes = [1, 8, 16], strides = [1, 1, 1]} : vector<8x8x16xf32> to vector<1x8x16xf32>
    %95 = vector.shape_cast %94 : vector<1x8x16xf32> to vector<8x16xf32>
    %96 = tpu.concatenate %89, %91, %93, %95 in 1 : vector<8x16xf32>, vector<8x16xf32>, vector<8x16xf32>, vector<8x16xf32> -> vector<8x64xf32>
    %97 = vector.extract_strided_slice %87 {offsets = [4, 0, 0], sizes = [1, 8, 16], strides = [1, 1, 1]} : vector<8x8x16xf32> to vector<1x8x16xf32>
    %98 = vector.shape_cast %97 : vector<1x8x16xf32> to vector<8x16xf32>
    %99 = vector.extract_strided_slice %87 {offsets = [5, 0, 0], sizes = [1, 8, 16], strides = [1, 1, 1]} : vector<8x8x16xf32> to vector<1x8x16xf32>
    %100 = vector.shape_cast %99 : vector<1x8x16xf32> to vector<8x16xf32>
    %101 = vector.extract_strided_slice %87 {offsets = [6, 0, 0], sizes = [1, 8, 16], strides = [1, 1, 1]} : vector<8x8x16xf32> to vector<1x8x16xf32>
    %102 = vector.shape_cast %101 : vector<1x8x16xf32> to vector<8x16xf32>
    %103 = vector.extract_strided_slice %87 {offsets = [7, 0, 0], sizes = [1, 8, 16], strides = [1, 1, 1]} : vector<8x8x16xf32> to vector<1x8x16xf32>
    %104 = vector.shape_cast %103 : vector<1x8x16xf32> to vector<8x16xf32>
    %105 = tpu.concatenate %98, %100, %102, %104 in 1 : vector<8x16xf32>, vector<8x16xf32>, vector<8x16xf32>, vector<8x16xf32> -> vector<8x64xf32>
    %106 = tpu.concatenate %96, %105 in 0 : vector<8x64xf32>, vector<8x64xf32> -> vector<16x64xf32>
    %107 = arith.truncf %106 : vector<16x64xf32> to vector<16x64xbf16>
    %c0_17 = arith.constant 0 : index
    %c0_18 = arith.constant 0 : index
    %108 = vector.load %arg6[%c0_17, %c0_18] : memref<64x64xbf16, #tpu.memory_space<vmem>>, vector<64x64xbf16>
    %cst_19 = arith.constant dense<0.000000e+00> : vector<16x64xf32>
    %109 = tpu.matmul %107, %108, %cst_19 {dimension_numbers = #tpu.dot_dimension_numbers<[1], [0], [0], [1], [0, 0, 1, 1], [], []>} : vector<16x64xbf16>, vector<64x64xbf16>, vector<16x64xf32> -> vector<16x64xf32>
    %110 = arith.addf %0, %109 : vector<16x64xf32>
    %111 = arith.mulf %110, %110 : vector<16x64xf32>
    %cst_20 = arith.constant dense<0.000000e+00> : vector<16xf32>
    %112 = vector.multi_reduction <add>, %111, %cst_20 [1] : vector<16x64xf32> to vector<16xf32>
    %113 = vector.shape_cast %112 : vector<16xf32> to vector<16x1xf32>
    %cst_21 = arith.constant 6.400000e+01 : f32
    %114 = vector.broadcast %cst_21 : f32 to vector<16x1xf32>
    %115 = arith.divf %113, %114 : vector<16x1xf32>
    %cst_22 = arith.constant 9.99999997E-7 : f32
    %116 = vector.broadcast %cst_22 : f32 to vector<16x1xf32>
    %117 = arith.addf %115, %116 : vector<16x1xf32>
    %118 = math.rsqrt %117 : vector<16x1xf32>
    %119 = vector.broadcast %118 : vector<16x1xf32> to vector<16x64xf32>
    %120 = arith.mulf %110, %119 : vector<16x64xf32>
    %121 = arith.truncf %120 : vector<16x64xf32> to vector<16x64xbf16>
    %c0_23 = arith.constant 0 : index
    %c0_24 = arith.constant 0 : index
    %122 = vector.load %arg7[%c0_23, %c0_24] : memref<64x256xbf16, #tpu.memory_space<vmem>>, vector<64x256xbf16>
    %cst_25 = arith.constant dense<0.000000e+00> : vector<16x256xf32>
    %123 = tpu.matmul %121, %122, %cst_25 {dimension_numbers = #tpu.dot_dimension_numbers<[1], [0], [0], [1], [0, 0, 1, 1], [], []>} : vector<16x64xbf16>, vector<64x256xbf16>, vector<16x256xf32> -> vector<16x256xf32>
    %124 = vector.extract_strided_slice %123 {offsets = [0, 0], sizes = [16, 128], strides = [1, 1]} : vector<16x256xf32> to vector<16x128xf32>
    %125 = vector.extract_strided_slice %123 {offsets = [0, 128], sizes = [16, 128], strides = [1, 1]} : vector<16x256xf32> to vector<16x128xf32>
    %126 = arith.negf %124 : vector<16x128xf32>
    %127 = math.exp %126 : vector<16x128xf32>
    %cst_26 = arith.constant 1.000000e+00 : f32
    %128 = vector.broadcast %cst_26 : f32 to vector<16x128xf32>
    %129 = arith.addf %128, %127 : vector<16x128xf32>
    %130 = arith.divf %128, %129 : vector<16x128xf32>
    %131 = arith.mulf %124, %130 : vector<16x128xf32>
    %132 = arith.mulf %131, %125 : vector<16x128xf32>
    %133 = arith.truncf %132 : vector<16x128xf32> to vector<16x128xbf16>
    %c0_27 = arith.constant 0 : index
    %c0_28 = arith.constant 0 : index
    %134 = vector.load %arg8[%c0_27, %c0_28] : memref<128x64xbf16, #tpu.memory_space<vmem>>, vector<128x64xbf16>
    %cst_29 = arith.constant dense<0.000000e+00> : vector<16x64xf32>
    %135 = tpu.matmul %133, %134, %cst_29 {dimension_numbers = #tpu.dot_dimension_numbers<[1], [0], [0], [1], [0, 0, 1, 1], [], []>} : vector<16x128xbf16>, vector<128x64xbf16>, vector<16x64xf32> -> vector<16x64xf32>
    %136 = arith.addf %110, %135 : vector<16x64xf32>
    %c0_30 = arith.constant 0 : index
    %c0_31 = arith.constant 0 : index
    %137 = vector.load %arg9[%c0_30, %c0_31] : memref<16x64xf32, #tpu.memory_space<vmem>>, vector<16x64xf32>
    tpu.vector_store %arg9[%c0_30, %c0_31], %136 {strides = array<i32>} : memref<16x64xf32, #tpu.memory_space<vmem>>, vector<16x64xf32>,
    return
  }
  func.func @transform_0(%arg0: i32) -> (i32, i32) {
    %c0_i32 = arith.constant 0 : i32
    %c0_i32_0 = arith.constant 0 : i32
    %c0_i32_1 = arith.constant 0 : i32
    return %c0_i32, %c0_i32_0 : i32, i32
  }
  func.func @transform_1(%arg0: i32) -> (i32, i32, i32) {
    %c0_i32 = arith.constant 0 : i32
    %c0_i32_0 = arith.constant 0 : i32
    %c0_i32_1 = arith.constant 0 : i32
    %c0_i32_2 = arith.constant 0 : i32
    return %c0_i32, %c0_i32_0, %c0_i32_1 : i32, i32, i32
  }
  func.func @transform_2(%arg0: i32) -> (i32, i32) {
    %c0_i32 = arith.constant 0 : i32
    %c0_i32_0 = arith.constant 0 : i32
    %c0_i32_1 = arith.constant 0 : i32
    return %c0_i32, %c0_i32_0 : i32, i32
  }
  func.func @transform_3(%arg0: i32) -> (i32, i32) {
    %c0_i32 = arith.constant 0 : i32
    %c0_i32_0 = arith.constant 0 : i32
    %c0_i32_1 = arith.constant 0 : i32
    return %c0_i32, %c0_i32_0 : i32, i32
  }
  func.func @transform_4(%arg0: i32) -> (i32, i32) {
    %c0_i32 = arith.constant 0 : i32
    %c0_i32_0 = arith.constant 0 : i32
    %c0_i32_1 = arith.constant 0 : i32
    return %c0_i32, %c0_i32_0 : i32, i32
  }
  func.func @transform_5(%arg0: i32) -> (i32, i32) {
    %c0_i32 = arith.constant 0 : i32
    %c0_i32_0 = arith.constant 0 : i32
    %c0_i32_1 = arith.constant 0 : i32
    return %c0_i32, %c0_i32_0 : i32, i32
  }
  func.func @transform_6(%arg0: i32) -> (i32, i32) {
    %c0_i32 = arith.constant 0 : i32
    %c0_i32_0 = arith.constant 0 : i32
    %c0_i32_1 = arith.constant 0 : i32
    return %c0_i32, %c0_i32_0 : i32, i32
  }
  func.func @transform_7(%arg0: i32) -> (i32, i32) {
    %c0_i32 = arith.constant 0 : i32
    %c0_i32_0 = arith.constant 0 : i32
    %c0_i32_1 = arith.constant 0 : i32
    return %c0_i32, %c0_i32_0 : i32, i32
  }
  func.func @transform_8(%arg0: i32) -> (i32, i32) {
    %c0_i32 = arith.constant 0 : i32
    %c0_i32_0 = arith.constant 0 : i32
    %c0_i32_1 = arith.constant 0 : i32
    return %c0_i32, %c0_i32_0 : i32, i32
  }
}

</mosaic_0001>

<llo_original>
// kernel: llama_decoder_layer.1
$region0: #{llama_decoder_layer.1}
  #allocation0 [shape = 'u32[]', space=smem, size = 0x4, offset = 0x4, fixed_abs, tag = 'smem constant byte address 0x4 - core index']
  #allocation1 [shape = 'u32[72,128]{1,0:T(1,128)}', space=vmem, size = 0x9000, scoped, tag = 'internal scratch']
  %s0 = inlined_call_operand.vmem [shape: f32[16,64], index: 0, kind: input, shape index: {}]
  %s1 = inlined_call_operand.vmem [shape: f32[8,8,8], index: 1, kind: input, shape index: {}]
  %s2 = inlined_call_operand.vmem [shape: bf16[16,512], index: 2, kind: input, shape index: {}]
  %s3 = inlined_call_operand.hbm [shape: bf16[512,128], index: 3, kind: input, shape index: {}]
  %s4 = inlined_call_operand.vmem [shape: f32[16,128], index: 4, kind: input, shape index: {}]
  %s5 = inlined_call_operand.vmem [shape: bf16[64,64], index: 5, kind: input, shape index: {}]
  %s6 = inlined_call_operand.vmem [shape: bf16[64,256], index: 6, kind: input, shape index: {}]
  %s7 = inlined_call_operand.vmem [shape: bf16[128,64], index: 7, kind: input, shape index: {}]
  %s8 = inlined_call_operand.hbm [shape: f32[16,64], index: 8, kind: output, shape index: {}]
  %s9 = sld [smem:[#allocation0]]
  $region46: #{llama_decoder_layer.1} parent=0
    _
  %s11 = ssub.s32 1, %s9
  %s12 = scalar_select 0, %s11, %s9
  $region1: #{llama_decoder_layer.1} parent=0
    #allocation2 [shape = 'u8[131072]{0}', space=vmem, size = 0x20000, scoped, tag = 'input window, operand 3, single buffered']
    #allocation3 [shape = 's32[1]{0}', space=sflag, size = 0x4, scoped, tag = 'scoped memory for llama_decoder_layer.1']
    #allocation4 [shape = 's32[1]{0}', space=sflag, size = 0x4, scoped, tag = 'scoped memory for llama_decoder_layer.1']
    #allocation5 [shape = 'u8[8192]{0}', space=vmem, size = 0x2000, scoped, tag = 'output window, operand 0, single buffered']
    %13 = vsyncpa [#allocation3], 0
    %14 = vsyncpa [#allocation4], 0
    // Predicated region
    $region2: #{llama_decoder_layer.1} parent=1 // pred_check
      _
    $region3: #{llama_decoder_layer.1} parent=1 // pred_check_branch
      %16 = sbr.rel (0) target = $region5
    $region4: #{llama_decoder_layer.1} parent=1 // pred_region
      _
    $region5: #{llama_decoder_layer.1} parent=1 // pred_fallthru
      _
    // Predicated region
    $region6: #{llama_decoder_layer.1} parent=1 // pred_check
      _
    $region7: #{llama_decoder_layer.1} parent=1 // pred_check_branch
      %18 = sbr.rel (0) target = $region9
    $region8: #{llama_decoder_layer.1} parent=1 // pred_region
      _
    $region9: #{llama_decoder_layer.1} parent=1 // pred_fallthru
      _
    // Predicated region
    $region10: #{llama_decoder_layer.1} parent=1 // pred_check
      _
    $region11: #{llama_decoder_layer.1} parent=1 // pred_check_branch
      %20 = sbr.rel (0) target = $region13
    $region12: #{llama_decoder_layer.1} parent=1 // pred_region
      _
    $region13: #{llama_decoder_layer.1} parent=1 // pred_fallthru
      _
    // Predicated region
    $region14: #{llama_decoder_layer.1} parent=1 // pred_check
      _
    $region15: #{llama_decoder_layer.1} parent=1 // pred_check_branch
      %22 = sbr.rel (0) target = $region17
    $region16: #{llama_decoder_layer.1} parent=1 // pred_region
      %24 = vsyncadd [#allocation3], 0
      %s25 = sshll.u32 %s3, 4
      %s26 = int_to_ptr.hbm [resolvable:$true] %s25
      %s27 = sshll.u32 [#allocation2], 4
      %s28 = int_to_ptr.vmem [resolvable:$true] %s27
      %33 = dma.hbm_to_vmem [thread:$0]  %s26, 4096, %s28, [#allocation3], 64, 64, 4
    $region17: #{llama_decoder_layer.1} parent=1 // pred_fallthru
      _
    // Predicated region
    $region18: #{llama_decoder_layer.1} parent=1 // pred_check
      _
    $region19: #{llama_decoder_layer.1} parent=1 // pred_check_branch
      %35 = sbr.rel (0) target = $region21
    $region20: #{llama_decoder_layer.1} parent=1 // pred_region
      _
    $region21: #{llama_decoder_layer.1} parent=1 // pred_fallthru
      _
    // Predicated region
    $region22: #{llama_decoder_layer.1} parent=1 // pred_check
      _
    $region23: #{llama_decoder_layer.1} parent=1 // pred_check_branch
      %37 = sbr.rel (0) target = $region25
    $region24: #{llama_decoder_layer.1} parent=1 // pred_region
      _
    $region25: #{llama_decoder_layer.1} parent=1 // pred_fallthru
      _
    // Predicated region
    $region26: #{llama_decoder_layer.1} parent=1 // pred_check
      _
    $region27: #{llama_decoder_layer.1} parent=1 // pred_check_branch
      %39 = sbr.rel (0) target = $region29
    $region28: #{llama_decoder_layer.1} parent=1 // pred_region
      _
    $region29: #{llama_decoder_layer.1} parent=1 // pred_fallthru
      _
    // Predicated region
    $region30: #{llama_decoder_layer.1} parent=1 // pred_check
      _
    $region31: #{llama_decoder_layer.1} parent=1 // pred_check_branch
      %41 = sbr.rel (0) target = $region33
    $region32: #{llama_decoder_layer.1} parent=1 // pred_region
      _
    $region33: #{llama_decoder_layer.1} parent=1 // pred_fallthru
      _
    // Predicated region
    $region34: #{llama_decoder_layer.1} parent=1 // pred_check
      _
    $region35: #{llama_decoder_layer.1} parent=1 // pred_check_branch
      %43 = sbr.rel (0) target = $region37
    $region36: #{llama_decoder_layer.1} parent=1 // pred_region
      %45 = dma.done [#allocation3], 4096
    $region37: #{llama_decoder_layer.1} parent=1 // pred_fallthru
      _
    %v47 = vld [vmem:[%s0] sm:$0xff]
    %v48 = vld [vmem:[%s0 + $0x8] sm:$0xff]
    %v49 = vmul.f32 %v47, %v47
    %v50 = vmul.f32 %v48, %v48
    %vm51 = vcmask 523264
    %v52 = vsel %vm51, %v49, 0.0
    %53 = vadd.xlane.f32.xlu0 %v52
    %v54 = vpop.xlane.xlu0 %53
    %v55 = vsel %vm51, %v50, 0.0
    %56 = vadd.xlane.f32.xlu0 %v55
    %v57 = vpop.xlane.xlu0 %56
    %v58 = vrcp.pop 64.0
    %v59 = vmul.f32 64.0, %v58
    %v60 = vsub.f32 1.0, %v59
    %v61 = vmul.f32 %v58, %v60
    %v62 = vadd.f32 %v58, %v61
    %vm63 = vweird.f32 %v58
    %v64 = vsel %vm63, %v58, %v62
    %v65 = vmul.f32 %v54, %v64
    %v66 = vmul.f32 %v57, %v64
    %v67 = vadd.f32 %v65, 1e-06
    %v68 = vadd.f32 %v66, 1e-06
    %v69 = vrsqrt.pop %v67
    %v70 = vmul.f32 %v69, %v67
    %v71 = vmul.f32 %v70, %v69
    %v72 = vmul.f32 0.5, %v71
    %v73 = vsub.f32 1.5, %v72
    %v74 = vmul.f32 %v69, %v73
    %vm75 = vweird.f32 %v67
    %vm76 = vweird.f32 %v69
    %vm77 = vmor %vm75, %vm76
    %v78 = vsel %vm77, %v69, %v74
    %v79 = vrsqrt.pop %v68
    %v80 = vmul.f32 %v79, %v68
    %v81 = vmul.f32 %v80, %v79
    %v82 = vmul.f32 0.5, %v81
    %v83 = vsub.f32 1.5, %v82
    %v84 = vmul.f32 %v79, %v83
    %vm85 = vweird.f32 %v68
    %vm86 = vweird.f32 %v79
    %vm87 = vmor %vm85, %vm86
    %v88 = vsel %vm87, %v79, %v84
    %v89 = vmul.f32 %v47, %v78
    %v90 = vmul.f32 %v48, %v88
    %v91 = vpack.c.bf16 %v89, %v89
    %v92 = vpack.c.bf16 %v90, %v90
    %v95 = vunpack.c.l.b16 %v91
    %v96 = vunpack.c.l.b16 %v92
    %v97 = vpack.c.b16 %v96, %v95
    %98 = vrot.lane.b32.xlu0 %v97, 64
    %v99 = vpop.permute.xlu0 %98
    %v102 = vsel %vm51, %v97, %v99
    %v104 = vld [vmem:[%s2] sm:$0xff]
    %v105 = vld [vmem:[%s2 + $0x8] sm:$0xff]
    %v106 = vld [vmem:[%s2 + $0x10] sm:$0xff]
    %v107 = vld [vmem:[%s2 + $0x18] sm:$0xff]
    %v108 = vunpack.c.l.bf16 %v102
    %v109 = vunpack.c.h.bf16 %v102
    %v110 = vunpack.c.l.bf16 %v104
    %v111 = vunpack.c.h.bf16 %v104
    %v112 = vunpack.c.l.bf16 %v105
    %v113 = vunpack.c.h.bf16 %v105
    %v114 = vunpack.c.l.bf16 %v106
    %v115 = vunpack.c.h.bf16 %v106
    %v116 = vunpack.c.l.bf16 %v107
    %v117 = vunpack.c.h.bf16 %v107
    %v118 = vmul.f32 %v108, %v110
    %v119 = vmul.f32 %v108, %v111
    %v120 = vmul.f32 %v108, %v112
    %v121 = vmul.f32 %v108, %v113
    %v122 = vmul.f32 %v109, %v114
    %v123 = vmul.f32 %v109, %v115
    %v124 = vmul.f32 %v109, %v116
    %v125 = vmul.f32 %v109, %v117
    %v126 = vpack.c.bf16 %v122, %v118
    %v127 = vpack.c.bf16 %v123, %v119
    %v128 = vpack.c.bf16 %v124, %v120
    %v129 = vpack.c.bf16 %v125, %v121
    %v130 = vld [vmem:[#allocation2] sm:$0xf]
    %v131 = vld [vmem:[#allocation2 + $0x4] sm:$0xf]
    %v132 = vld [vmem:[#allocation2 + $0x8] sm:$0xf]
    %v133 = vld [vmem:[#allocation2 + $0xc] sm:$0xf]
    %v134 = vld [vmem:[#allocation2 + $0x10] sm:$0xf]
    %v135 = vld [vmem:[#allocation2 + $0x14] sm:$0xf]
    %v136 = vld [vmem:[#allocation2 + $0x18] sm:$0xf]
    %v137 = vld [vmem:[#allocation2 + $0x1c] sm:$0xf]
    %v138 = vld [vmem:[#allocation2 + $0x20] sm:$0xf]
    %v139 = vld [vmem:[#allocation2 + $0x24] sm:$0xf]
    %v140 = vld [vmem:[#allocation2 + $0x28] sm:$0xf]
    %v141 = vld [vmem:[#allocation2 + $0x2c] sm:$0xf]
    %v142 = vld [vmem:[#allocation2 + $0x30] sm:$0xf]
    %v143 = vld [vmem:[#allocation2 + $0x34] sm:$0xf]
    %v144 = vld [vmem:[#allocation2 + $0x38] sm:$0xf]
    %v145 = vld [vmem:[#allocation2 + $0x3c] sm:$0xf]
    %v146 = vld [vmem:[#allocation2 + $0x40] sm:$0xf]
    %v147 = vld [vmem:[#allocation2 + $0x44] sm:$0xf]
    %v148 = vld [vmem:[#allocation2 + $0x48] sm:$0xf]
    %v149 = vld [vmem:[#allocation2 + $0x4c] sm:$0xf]
    %v150 = vld [vmem:[#allocation2 + $0x50] sm:$0xf]
    %v151 = vld [vmem:[#allocation2 + $0x54] sm:$0xf]
    %v152 = vld [vmem:[#allocation2 + $0x58] sm:$0xf]
    %v153 = vld [vmem:[#allocation2 + $0x5c] sm:$0xf]
    %v154 = vld [vmem:[#allocation2 + $0x60] sm:$0xf]
    %v155 = vld [vmem:[#allocation2 + $0x64] sm:$0xf]
    %v156 = vld [vmem:[#allocation2 + $0x68] sm:$0xf]
    %v157 = vld [vmem:[#allocation2 + $0x6c] sm:$0xf]
    %v158 = vld [vmem:[#allocation2 + $0x70] sm:$0xf]
    %v159 = vld [vmem:[#allocation2 + $0x74] sm:$0xf]
    %v160 = vld [vmem:[#allocation2 + $0x78] sm:$0xf]
    %v161 = vld [vmem:[#allocation2 + $0x7c] sm:$0xf]
    %v162 = vld [vmem:[#allocation2 + $0x80] sm:$0xf]
    %v163 = vld [vmem:[#allocation2 + $0x84] sm:$0xf]
    %v164 = vld [vmem:[#allocation2 + $0x88] sm:$0xf]
    %v165 = vld [vmem:[#allocation2 + $0x8c] sm:$0xf]
    %v166 = vld [vmem:[#allocation2 + $0x90] sm:$0xf]
    %v167 = vld [vmem:[#allocation2 + $0x94] sm:$0xf]
    %v168 = vld [vmem:[#allocation2 + $0x98] sm:$0xf]
    %v169 = vld [vmem:[#allocation2 + $0x9c] sm:$0xf]
    %v170 = vld [vmem:[#allocation2 + $0xa0] sm:$0xf]
    %v171 = vld [vmem:[#allocation2 + $0xa4] sm:$0xf]
    %v172 = vld [vmem:[#allocation2 + $0xa8] sm:$0xf]
    %v173 = vld [vmem:[#allocation2 + $0xac] sm:$0xf]
    %v174 = vld [vmem:[#allocation2 + $0xb0] sm:$0xf]
    %v175 = vld [vmem:[#allocation2 + $0xb4] sm:$0xf]
    %v176 = vld [vmem:[#allocation2 + $0xb8] sm:$0xf]
    %v177 = vld [vmem:[#allocation2 + $0xbc] sm:$0xf]
    %v178 = vld [vmem:[#allocation2 + $0xc0] sm:$0xf]
    %v179 = vld [vmem:[#allocation2 + $0xc4] sm:$0xf]
    %v180 = vld [vmem:[#allocation2 + $0xc8] sm:$0xf]
    %v181 = vld [vmem:[#allocation2 + $0xcc] sm:$0xf]
    %v182 = vld [vmem:[#allocation2 + $0xd0] sm:$0xf]
    %v183 = vld [vmem:[#allocation2 + $0xd4] sm:$0xf]
    %v184 = vld [vmem:[#allocation2 + $0xd8] sm:$0xf]
    %v185 = vld [vmem:[#allocation2 + $0xdc] sm:$0xf]
    %v186 = vld [vmem:[#allocation2 + $0xe0] sm:$0xf]
    %v187 = vld [vmem:[#allocation2 + $0xe4] sm:$0xf]
    %v188 = vld [vmem:[#allocation2 + $0xe8] sm:$0xf]
    %v189 = vld [vmem:[#allocation2 + $0xec] sm:$0xf]
    %v190 = vld [vmem:[#allocation2 + $0xf0] sm:$0xf]
    %v191 = vld [vmem:[#allocation2 + $0xf4] sm:$0xf]
    %v192 = vld [vmem:[#allocation2 + $0xf8] sm:$0xf]
    %v193 = vld [vmem:[#allocation2 + $0xfc] sm:$0xf]
    %v194 = vld [vmem:[%s4] sm:$0xff]
    %v195 = vld [vmem:[%s4 + $0x8] sm:$0xff]
    %v260 = vunpack.c.l.b16 %v130
    %v261 = vunpack.c.l.b16 %v131
    %v262 = vunpack.c.l.b16 %v132
    %v263 = vunpack.c.l.b16 %v133
    %v264 = vunpack.c.l.b16 %v134
    %v265 = vunpack.c.l.b16 %v135
    %v266 = vunpack.c.l.b16 %v136
    %v267 = vunpack.c.l.b16 %v137
    %v268 = vunpack.c.l.b16 %v138
    %v269 = vunpack.c.l.b16 %v139
    %v270 = vunpack.c.l.b16 %v140
    %v271 = vunpack.c.l.b16 %v141
    %v272 = vunpack.c.l.b16 %v142
    %v273 = vunpack.c.l.b16 %v143
    %v274 = vunpack.c.l.b16 %v144
    %v275 = vunpack.c.l.b16 %v145
    %v276 = vunpack.c.l.b16 %v146
    %v277 = vunpack.c.l.b16 %v147
    %v278 = vunpack.c.l.b16 %v148
    %v279 = vunpack.c.l.b16 %v149
    %v280 = vunpack.c.l.b16 %v150
    %v281 = vunpack.c.l.b16 %v151
    %v282 = vunpack.c.l.b16 %v152
    %v283 = vunpack.c.l.b16 %v153
    %v284 = vunpack.c.l.b16 %v154
    %v285 = vunpack.c.l.b16 %v155
    %v286 = vunpack.c.l.b16 %v156
    %v287 = vunpack.c.l.b16 %v157
    %v288 = vunpack.c.l.b16 %v158
    %v289 = vunpack.c.l.b16 %v159
    %v290 = vunpack.c.l.b16 %v160
    %v291 = vunpack.c.l.b16 %v161
    %v292 = vunpack.c.l.b16 %v162
    %v293 = vunpack.c.l.b16 %v163
    %v294 = vunpack.c.l.b16 %v164
    %v295 = vunpack.c.l.b16 %v165
    %v296 = vunpack.c.l.b16 %v166
    %v297 = vunpack.c.l.b16 %v167
    %v298 = vunpack.c.l.b16 %v168
    %v299 = vunpack.c.l.b16 %v169
    %v300 = vunpack.c.l.b16 %v170
    %v301 = vunpack.c.l.b16 %v171
    %v302 = vunpack.c.l.b16 %v172
    %v303 = vunpack.c.l.b16 %v173
    %v304 = vunpack.c.l.b16 %v174
    %v305 = vunpack.c.l.b16 %v175
    %v306 = vunpack.c.l.b16 %v176
    %v307 = vunpack.c.l.b16 %v177
    %v308 = vunpack.c.l.b16 %v178
    %v309 = vunpack.c.l.b16 %v179
    %v310 = vunpack.c.l.b16 %v180
    %v311 = vunpack.c.l.b16 %v181
    %v312 = vunpack.c.l.b16 %v182
    %v313 = vunpack.c.l.b16 %v183
    %v314 = vunpack.c.l.b16 %v184
    %v315 = vunpack.c.l.b16 %v185
    %v316 = vunpack.c.l.b16 %v186
    %v317 = vunpack.c.l.b16 %v187
    %v318 = vunpack.c.l.b16 %v188
    %v319 = vunpack.c.l.b16 %v189
    %v320 = vunpack.c.l.b16 %v190
    %v321 = vunpack.c.l.b16 %v191
    %v322 = vunpack.c.l.b16 %v192
    %v323 = vunpack.c.l.b16 %v193
    %v324 = vpack.c.b16 %v261, %v260
    %v325 = vpack.c.b16 %v263, %v262
    %v326 = vpack.c.b16 %v265, %v264
    %v327 = vpack.c.b16 %v267, %v266
    %v328 = vpack.c.b16 %v269, %v268
    %v329 = vpack.c.b16 %v271, %v270
    %v330 = vpack.c.b16 %v273, %v272
    %v331 = vpack.c.b16 %v275, %v274
    %v332 = vpack.c.b16 %v277, %v276
    %v333 = vpack.c.b16 %v279, %v278
    %v334 = vpack.c.b16 %v281, %v280
    %v335 = vpack.c.b16 %v283, %v282
    %v336 = vpack.c.b16 %v285, %v284
    %v337 = vpack.c.b16 %v287, %v286
    %v338 = vpack.c.b16 %v289, %v288
    %v339 = vpack.c.b16 %v291, %v290
    %v340 = vpack.c.b16 %v293, %v292
    %v341 = vpack.c.b16 %v295, %v294
    %v342 = vpack.c.b16 %v297, %v296
    %v343 = vpack.c.b16 %v299, %v298
    %v344 = vpack.c.b16 %v301, %v300
    %v345 = vpack.c.b16 %v303, %v302
    %v346 = vpack.c.b16 %v305, %v304
    %v347 = vpack.c.b16 %v307, %v306
    %v348 = vpack.c.b16 %v309, %v308
    %v349 = vpack.c.b16 %v311, %v310
    %v350 = vpack.c.b16 %v313, %v312
    %v351 = vpack.c.b16 %v315, %v314
    %v352 = vpack.c.b16 %v317, %v316
    %v353 = vpack.c.b16 %v319, %v318
    %v354 = vpack.c.b16 %v321, %v320
    %v355 = vpack.c.b16 %v323, %v322
    %388 = vmatpush.bf16.msra.mxu0 %v331
    %389 = vmatpush.bf16.msra.mxu0 %v330
    %390 = vmatpush.bf16.msra.mxu0 %v329
    %391 = vmatpush.bf16.msra.mxu0 %v328
    %392 = vmatpush.bf16.msra.mxu0 %v327
    %393 = vmatpush.bf16.msra.mxu0 %v326
    %394 = vmatpush.bf16.msra.mxu0 %v325
    %395 = vmatpush.bf16.msra.mxu0 %v324
    %396 = vmatmul.bf16.gmra.mxu0 %v126
    %v397 = vpop.f32.mrf.mxu0
    %v398 = vadd.f32 %v194, %v397
    %v399 = vpop.f32.mrf.mxu0
    %v400 = vadd.f32 %v195, %v399
    %401 = vdwg.mxu0
    %402 = vmatpush.bf16.msra.mxu0 %v339
    %403 = vmatpush.bf16.msra.mxu0 %v338
    %404 = vmatpush.bf16.msra.mxu0 %v337
    %405 = vmatpush.bf16.msra.mxu0 %v336
    %406 = vmatpush.bf16.msra.mxu0 %v335
    %407 = vmatpush.bf16.msra.mxu0 %v334
    %408 = vmatpush.bf16.msra.mxu0 %v333
    %409 = vmatpush.bf16.msra.mxu0 %v332
    %410 = vmatmul.bf16.gmra.mxu0 %v127
    %v411 = vpop.f32.mrf.mxu0
    %v412 = vadd.f32 %v398, %v411
    %v413 = vpop.f32.mrf.mxu0
    %v414 = vadd.f32 %v400, %v413
    %415 = vdwg.mxu0
    %416 = vmatpush.bf16.msra.mxu0 %v347
    %417 = vmatpush.bf16.msra.mxu0 %v346
    %418 = vmatpush.bf16.msra.mxu0 %v345
    %419 = vmatpush.bf16.msra.mxu0 %v344
    %420 = vmatpush.bf16.msra.mxu0 %v343
    %421 = vmatpush.bf16.msra.mxu0 %v342
    %422 = vmatpush.bf16.msra.mxu0 %v341
    %423 = vmatpush.bf16.msra.mxu0 %v340
    %424 = vmatmul.bf16.gmra.mxu0 %v128
    %v425 = vpop.f32.mrf.mxu0
    %v426 = vadd.f32 %v412, %v425
    %v427 = vpop.f32.mrf.mxu0
    %v428 = vadd.f32 %v414, %v427
    %429 = vdwg.mxu0
    %430 = vmatpush.bf16.msra.mxu0 %v355
    %431 = vmatpush.bf16.msra.mxu0 %v354
    %432 = vmatpush.bf16.msra.mxu0 %v353
    %433 = vmatpush.bf16.msra.mxu0 %v352
    %434 = vmatpush.bf16.msra.mxu0 %v351
    %435 = vmatpush.bf16.msra.mxu0 %v350
    %436 = vmatpush.bf16.msra.mxu0 %v349
    %437 = vmatpush.bf16.msra.mxu0 %v348
    %438 = vmatmul.bf16.gmra.mxu0 %v129
    %v439 = vpop.f32.mrf.mxu0
    %v440 = vadd.f32 %v426, %v439
    %v441 = vpop.f32.mrf.mxu0
    %v442 = vadd.f32 %v428, %v441
    %443 = vdwg.mxu0
    %445 = vrot.lane.b32.xlu0 %v440, 112
    %v446 = vpop.permute.xlu0 %445
    %448 = vrot.lane.b32.xlu0 %v440, 96
    %v449 = vpop.permute.xlu0 %448
    %451 = vrot.lane.b32.xlu0 %v440, 80
    %v452 = vpop.permute.xlu0 %451
    %455 = vrot.lane.b32.xlu0 %v442, 112
    %v456 = vpop.permute.xlu0 %455
    %458 = vrot.lane.b32.xlu0 %v442, 96
    %v459 = vpop.permute.xlu0 %458
    %461 = vrot.lane.b32.xlu0 %v442, 80
    %v462 = vpop.permute.xlu0 %461
    %v464 = vpack.c.bf16 %v440, %v440
    %v465 = vpack.c.bf16 %v446, %v446
    %v466 = vpack.c.bf16 %v449, %v449
    %v467 = vpack.c.bf16 %v452, %v452
    %v468 = vpack.c.bf16 %v442, %v442
    %v469 = vpack.c.bf16 %v456, %v456
    %v470 = vpack.c.bf16 %v459, %v459
    %v471 = vpack.c.bf16 %v462, %v462
    %v472 = vld [vmem:[%s1] sm:$0xff]
    %v473 = vld [vmem:[%s1 + $0x8] sm:$0xff]
    %v474 = vld [vmem:[%s1 + $0x10] sm:$0xff]
    %v475 = vld [vmem:[%s1 + $0x18] sm:$0xff]
    %v476 = vld [vmem:[%s1 + $0x20] sm:$0xff]
    %v477 = vld [vmem:[%s1 + $0x28] sm:$0xff]
    %v478 = vld [vmem:[%s1 + $0x30] sm:$0xff]
    %v479 = vld [vmem:[%s1 + $0x38] sm:$0xff]
    %v481 = vunpack.c.l.b16 %v464
    %v482 = vpack.c.b16 %v481, %v481
    %483 = vrot.lane.b32.xlu0 %v482, 64
    %v484 = vpop.permute.xlu0 %483
    %vm485 = vcmask 130048
    %v487 = vsel %vm485, %v464, 0
    %v490 = vsel %vm485, %v484, 0
    %492 = vmatpush.bf16.xpose.msra.mxu0 0
    %493 = vmatpush.bf16.xpose.msra.mxu0 0
    %494 = vmatpush.bf16.xpose.msra.mxu0 0
    %495 = vmatpush.bf16.xpose.msra.mxu0 0
    %496 = vmatpush.bf16.xpose.msra.mxu0 0
    %497 = vmatpush.bf16.xpose.msra.mxu0 0
    %498 = vmatpush.bf16.xpose.msra.mxu0 0
    %499 = vmatpush.bf16.xpose.msra.mxu0 %v490
    %500 = vmatmul.bf16.gmra.mxu0 %v487
    %v501 = vpop.f32.mrf.mxu0
    %v502 = vadd.f32 %v472, %v501
    %v503 = vpop.f32.mrf.mxu0
    %504 = vdwg.mxu0
    %v506 = vsel %vm485, %v465, 0
    %508 = vmatpush.bf16.xpose.msra.mxu0 0
    %509 = vmatpush.bf16.xpose.msra.mxu0 0
    %510 = vmatpush.bf16.xpose.msra.mxu0 0
    %511 = vmatpush.bf16.xpose.msra.mxu0 0
    %512 = vmatpush.bf16.xpose.msra.mxu0 0
    %513 = vmatpush.bf16.xpose.msra.mxu0 0
    %514 = vmatpush.bf16.xpose.msra.mxu0 0
    %515 = vmatpush.bf16.xpose.msra.mxu0 %v490
    %516 = vmatmul.bf16.gmra.mxu0 %v506
    %v517 = vpop.f32.mrf.mxu0
    %v518 = vadd.f32 %v473, %v517
    %v519 = vpop.f32.mrf.mxu0
    %520 = vdwg.mxu0
    %v522 = vunpack.c.l.b16 %v465
    %v523 = vpack.c.b16 %v522, %v522
    %524 = vrot.lane.b32.xlu0 %v523, 64
    %v525 = vpop.permute.xlu0 %524
    %v527 = vsel %vm485, %v466, 0
    %v530 = vsel %vm485, %v525, 0
    %532 = vmatpush.bf16.xpose.msra.mxu0 0
    %533 = vmatpush.bf16.xpose.msra.mxu0 0
    %534 = vmatpush.bf16.xpose.msra.mxu0 0
    %535 = vmatpush.bf16.xpose.msra.mxu0 0
    %536 = vmatpush.bf16.xpose.msra.mxu0 0
    %537 = vmatpush.bf16.xpose.msra.mxu0 0
    %538 = vmatpush.bf16.xpose.msra.mxu0 0
    %539 = vmatpush.bf16.xpose.msra.mxu0 %v530
    %540 = vmatmul.bf16.gmra.mxu0 %v527
    %v541 = vpop.f32.mrf.mxu0
    %v542 = vadd.f32 %v474, %v541
    %v543 = vpop.f32.mrf.mxu0
    %544 = vdwg.mxu0
    %v546 = vsel %vm485, %v467, 0
    %548 = vmatpush.bf16.xpose.msra.mxu0 0
    %549 = vmatpush.bf16.xpose.msra.mxu0 0
    %550 = vmatpush.bf16.xpose.msra.mxu0 0
    %551 = vmatpush.bf16.xpose.msra.mxu0 0
    %552 = vmatpush.bf16.xpose.msra.mxu0 0
    %553 = vmatpush.bf16.xpose.msra.mxu0 0
    %554 = vmatpush.bf16.xpose.msra.mxu0 0
    %555 = vmatpush.bf16.xpose.msra.mxu0 %v530
    %556 = vmatmul.bf16.gmra.mxu0 %v546
    %v557 = vpop.f32.mrf.mxu0
    %v558 = vadd.f32 %v475, %v557
    %v559 = vpop.f32.mrf.mxu0
    %560 = vdwg.mxu0
    %v562 = vunpack.c.l.b16 %v468
    %v563 = vpack.c.b16 %v562, %v562
    %564 = vrot.lane.b32.xlu0 %v563, 64
    %v565 = vpop.permute.xlu0 %564
    %v567 = vsel %vm485, %v468, 0
    %v570 = vsel %vm485, %v565, 0
    %572 = vmatpush.bf16.xpose.msra.mxu0 0
    %573 = vmatpush.bf16.xpose.msra.mxu0 0
    %574 = vmatpush.bf16.xpose.msra.mxu0 0
    %575 = vmatpush.bf16.xpose.msra.mxu0 0
    %576 = vmatpush.bf16.xpose.msra.mxu0 0
    %577 = vmatpush.bf16.xpose.msra.mxu0 0
    %578 = vmatpush.bf16.xpose.msra.mxu0 0
    %579 = vmatpush.bf16.xpose.msra.mxu0 %v570
    %580 = vmatmul.bf16.gmra.mxu0 %v567
    %v581 = vpop.f32.mrf.mxu0
    %v582 = vadd.f32 %v476, %v581
    %v583 = vpop.f32.mrf.mxu0
    %584 = vdwg.mxu0
    %v586 = vsel %vm485, %v469, 0
    %588 = vmatpush.bf16.xpose.msra.mxu0 0
    %589 = vmatpush.bf16.xpose.msra.mxu0 0
    %590 = vmatpush.bf16.xpose.msra.mxu0 0
    %591 = vmatpush.bf16.xpose.msra.mxu0 0
    %592 = vmatpush.bf16.xpose.msra.mxu0 0
    %593 = vmatpush.bf16.xpose.msra.mxu0 0
    %594 = vmatpush.bf16.xpose.msra.mxu0 0
    %595 = vmatpush.bf16.xpose.msra.mxu0 %v570
    %596 = vmatmul.bf16.gmra.mxu0 %v586
    %v597 = vpop.f32.mrf.mxu0
    %v598 = vadd.f32 %v477, %v597
    %v599 = vpop.f32.mrf.mxu0
    %600 = vdwg.mxu0
    %v602 = vunpack.c.l.b16 %v469
    %v603 = vpack.c.b16 %v602, %v602
    %604 = vrot.lane.b32.xlu0 %v603, 64
    %v605 = vpop.permute.xlu0 %604
    %v607 = vsel %vm485, %v470, 0
    %v610 = vsel %vm485, %v605, 0
    %612 = vmatpush.bf16.xpose.msra.mxu0 0
    %613 = vmatpush.bf16.xpose.msra.mxu0 0
    %614 = vmatpush.bf16.xpose.msra.mxu0 0
    %615 = vmatpush.bf16.xpose.msra.mxu0 0
    %616 = vmatpush.bf16.xpose.msra.mxu0 0
    %617 = vmatpush.bf16.xpose.msra.mxu0 0
    %618 = vmatpush.bf16.xpose.msra.mxu0 0
    %619 = vmatpush.bf16.xpose.msra.mxu0 %v610
    %620 = vmatmul.bf16.gmra.mxu0 %v607
    %v621 = vpop.f32.mrf.mxu0
    %v622 = vadd.f32 %v478, %v621
    %v623 = vpop.f32.mrf.mxu0
    %624 = vdwg.mxu0
    %v626 = vsel %vm485, %v471, 0
    %628 = vmatpush.bf16.xpose.msra.mxu0 0
    %629 = vmatpush.bf16.xpose.msra.mxu0 0
    %630 = vmatpush.bf16.xpose.msra.mxu0 0
    %631 = vmatpush.bf16.xpose.msra.mxu0 0
    %632 = vmatpush.bf16.xpose.msra.mxu0 0
    %633 = vmatpush.bf16.xpose.msra.mxu0 0
    %634 = vmatpush.bf16.xpose.msra.mxu0 0
    %635 = vmatpush.bf16.xpose.msra.mxu0 %v610
    %636 = vmatmul.bf16.gmra.mxu0 %v626
    %v637 = vpop.f32.mrf.mxu0
    %v638 = vadd.f32 %v479, %v637
    %v639 = vpop.f32.mrf.mxu0
    %640 = vdwg.mxu0
    %vm641 = vcmask 64512
    %v642 = vsel %vm641, %v502, -inf
    %643 = vmax.xlane.f32.xlu0 %v642
    %v644 = vpop.xlane.xlu0 %643
    %v645 = vsel %vm641, %v518, -inf
    %646 = vmax.xlane.f32.xlu0 %v645
    %v647 = vpop.xlane.xlu0 %646
    %v648 = vsel %vm641, %v542, -inf
    %649 = vmax.xlane.f32.xlu0 %v648
    %v650 = vpop.xlane.xlu0 %649
    %v651 = vsel %vm641, %v558, -inf
    %652 = vmax.xlane.f32.xlu0 %v651
    %v653 = vpop.xlane.xlu0 %652
    %v654 = vsel %vm641, %v582, -inf
    %655 = vmax.xlane.f32.xlu0 %v654
    %v656 = vpop.xlane.xlu0 %655
    %v657 = vsel %vm641, %v598, -inf
    %658 = vmax.xlane.f32.xlu0 %v657
    %v659 = vpop.xlane.xlu0 %658
    %v660 = vsel %vm641, %v622, -inf
    %661 = vmax.xlane.f32.xlu0 %v660
    %v662 = vpop.xlane.xlu0 %661
    %v663 = vsel %vm641, %v638, -inf
    %664 = vmax.xlane.f32.xlu0 %v663
    %v665 = vpop.xlane.xlu0 %664
    %v666 = vsub.f32 %v502, %v644
    %v667 = vsub.f32 %v518, %v647
    %v668 = vsub.f32 %v542, %v650
    %v669 = vsub.f32 %v558, %v653
    %v670 = vsub.f32 %v582, %v656
    %v671 = vsub.f32 %v598, %v659
    %v672 = vsub.f32 %v622, %v662
    %v673 = vsub.f32 %v638, %v665
    %v674 = vmul.f32 %v666, 1.442695
    %v675 = vpow.pop %v674
    %v676 = vmul.f32 %v667, 1.442695
    %v677 = vpow.pop %v676
    %v678 = vmul.f32 %v668, 1.442695
    %v679 = vpow.pop %v678
    %v680 = vmul.f32 %v669, 1.442695
    %v681 = vpow.pop %v680
    %v682 = vmul.f32 %v670, 1.442695
    %v683 = vpow.pop %v682
    %v684 = vmul.f32 %v671, 1.442695
    %v685 = vpow.pop %v684
    %v686 = vmul.f32 %v672, 1.442695
    %v687 = vpow.pop %v686
    %v688 = vmul.f32 %v673, 1.442695
    %v689 = vpow.pop %v688
    %v690 = vsel %vm641, %v675, 0.0
    %691 = vadd.xlane.f32.xlu0 %v690
    %v692 = vpop.xlane.xlu0 %691
    %v693 = vsel %vm641, %v677, 0.0
    %694 = vadd.xlane.f32.xlu0 %v693
    %v695 = vpop.xlane.xlu0 %694
    %v696 = vsel %vm641, %v679, 0.0
    %697 = vadd.xlane.f32.xlu0 %v696
    %v698 = vpop.xlane.xlu0 %697
    %v699 = vsel %vm641, %v681, 0.0
    %700 = vadd.xlane.f32.xlu0 %v699
    %v701 = vpop.xlane.xlu0 %700
    %v702 = vsel %vm641, %v683, 0.0
    %703 = vadd.xlane.f32.xlu0 %v702
    %v704 = vpop.xlane.xlu0 %703
    %v705 = vsel %vm641, %v685, 0.0
    %706 = vadd.xlane.f32.xlu0 %v705
    %v707 = vpop.xlane.xlu0 %706
    %v708 = vsel %vm641, %v687, 0.0
    %709 = vadd.xlane.f32.xlu0 %v708
    %v710 = vpop.xlane.xlu0 %709
    %v711 = vsel %vm641, %v689, 0.0
    %712 = vadd.xlane.f32.xlu0 %v711
    %v713 = vpop.xlane.xlu0 %712
    %v714 = vrcp.pop %v692
    %v715 = vrcp.pop %v695
    %v716 = vrcp.pop %v698
    %v717 = vrcp.pop %v701
    %v718 = vrcp.pop %v704
    %v719 = vrcp.pop %v707
    %v720 = vrcp.pop %v710
    %v721 = vrcp.pop %v713
    %v722 = vmul.f32 %v675, %v714
    %v723 = vmul.f32 %v677, %v715
    %v724 = vmul.f32 %v679, %v716
    %v725 = vmul.f32 %v681, %v717
    %v726 = vmul.f32 %v683, %v718
    %v727 = vmul.f32 %v685, %v719
    %v728 = vmul.f32 %v687, %v720
    %v729 = vmul.f32 %v689, %v721
    %v730 = vpack.c.bf16 %v722, %v722
    %v731 = vpack.c.bf16 %v723, %v723
    %v732 = vpack.c.bf16 %v724, %v724
    %v733 = vpack.c.bf16 %v725, %v725
    %v734 = vpack.c.bf16 %v726, %v726
    %v735 = vpack.c.bf16 %v727, %v727
    %v736 = vpack.c.bf16 %v728, %v728
    %v737 = vpack.c.bf16 %v729, %v729
    %738 = vrot.lane.b32.xlu0 %v482, 32
    %v739 = vpop.permute.xlu0 %738
    %v741 = vsel %vm641, %v730, 0
    %vm743 = vcmask 1043456
    %v745 = vsel %vm743, %v739, 0
    %747 = vmatpush.bf16.msra.mxu0 0
    %748 = vmatpush.bf16.msra.mxu0 0
    %749 = vmatpush.bf16.msra.mxu0 0
    %750 = vmatpush.bf16.msra.mxu0 0
    %751 = vmatpush.bf16.msra.mxu0 0
    %752 = vmatpush.bf16.msra.mxu0 0
    %753 = vmatpush.bf16.msra.mxu0 0
    %754 = vmatpush.bf16.msra.mxu0 %v745
    %755 = vmatmul.bf16.gmra.mxu0 %v741
    %v756 = vpop.f32.mrf.mxu0
    %v757 = vadd.f32 0.0, %v756
    %v758 = vpop.f32.mrf.mxu0
    %759 = vdwg.mxu0
    %v761 = vsel %vm641, %v731, 0
    %763 = vmatpush.bf16.msra.mxu0 0
    %764 = vmatpush.bf16.msra.mxu0 0
    %765 = vmatpush.bf16.msra.mxu0 0
    %766 = vmatpush.bf16.msra.mxu0 0
    %767 = vmatpush.bf16.msra.mxu0 0
    %768 = vmatpush.bf16.msra.mxu0 0
    %769 = vmatpush.bf16.msra.mxu0 0
    %770 = vmatpush.bf16.msra.mxu0 %v745
    %771 = vmatmul.bf16.gmra.mxu0 %v761
    %v772 = vpop.f32.mrf.mxu0
    %v773 = vadd.f32 0.0, %v772
    %v774 = vpop.f32.mrf.mxu0
    %775 = vdwg.mxu0
    %776 = vrot.lane.b32.xlu0 %v523, 32
    %v777 = vpop.permute.xlu0 %776
    %v779 = vsel %vm641, %v732, 0
    %v782 = vsel %vm743, %v777, 0
    %784 = vmatpush.bf16.msra.mxu0 0
    %785 = vmatpush.bf16.msra.mxu0 0
    %786 = vmatpush.bf16.msra.mxu0 0
    %787 = vmatpush.bf16.msra.mxu0 0
    %788 = vmatpush.bf16.msra.mxu0 0
    %789 = vmatpush.bf16.msra.mxu0 0
    %790 = vmatpush.bf16.msra.mxu0 0
    %791 = vmatpush.bf16.msra.mxu0 %v782
    %792 = vmatmul.bf16.gmra.mxu0 %v779
    %v793 = vpop.f32.mrf.mxu0
    %v794 = vadd.f32 0.0, %v793
    %v795 = vpop.f32.mrf.mxu0
    %796 = vdwg.mxu0
    %v798 = vsel %vm641, %v733, 0
    %800 = vmatpush.bf16.msra.mxu0 0
    %801 = vmatpush.bf16.msra.mxu0 0
    %802 = vmatpush.bf16.msra.mxu0 0
    %803 = vmatpush.bf16.msra.mxu0 0
    %804 = vmatpush.bf16.msra.mxu0 0
    %805 = vmatpush.bf16.msra.mxu0 0
    %806 = vmatpush.bf16.msra.mxu0 0
    %807 = vmatpush.bf16.msra.mxu0 %v782
    %808 = vmatmul.bf16.gmra.mxu0 %v798
    %v809 = vpop.f32.mrf.mxu0
    %v810 = vadd.f32 0.0, %v809
    %v811 = vpop.f32.mrf.mxu0
    %812 = vdwg.mxu0
    %813 = vrot.lane.b32.xlu0 %v563, 32
    %v814 = vpop.permute.xlu0 %813
    %v816 = vsel %vm641, %v734, 0
    %v819 = vsel %vm743, %v814, 0
    %821 = vmatpush.bf16.msra.mxu0 0
    %822 = vmatpush.bf16.msra.mxu0 0
    %823 = vmatpush.bf16.msra.mxu0 0
    %824 = vmatpush.bf16.msra.mxu0 0
    %825 = vmatpush.bf16.msra.mxu0 0
    %826 = vmatpush.bf16.msra.mxu0 0
    %827 = vmatpush.bf16.msra.mxu0 0
    %828 = vmatpush.bf16.msra.mxu0 %v819
    %829 = vmatmul.bf16.gmra.mxu0 %v816
    %v830 = vpop.f32.mrf.mxu0
    %v831 = vadd.f32 0.0, %v830
    %v832 = vpop.f32.mrf.mxu0
    %833 = vdwg.mxu0
    %v835 = vsel %vm641, %v735, 0
    %837 = vmatpush.bf16.msra.mxu0 0
    %838 = vmatpush.bf16.msra.mxu0 0
    %839 = vmatpush.bf16.msra.mxu0 0
    %840 = vmatpush.bf16.msra.mxu0 0
    %841 = vmatpush.bf16.msra.mxu0 0
    %842 = vmatpush.bf16.msra.mxu0 0
    %843 = vmatpush.bf16.msra.mxu0 0
    %844 = vmatpush.bf16.msra.mxu0 %v819
    %845 = vmatmul.bf16.gmra.mxu0 %v835
    %v846 = vpop.f32.mrf.mxu0
    %v847 = vadd.f32 0.0, %v846
    %v848 = vpop.f32.mrf.mxu0
    %849 = vdwg.mxu0
    %850 = vrot.lane.b32.xlu0 %v603, 32
    %v851 = vpop.permute.xlu0 %850
    %v853 = vsel %vm641, %v736, 0
    %v856 = vsel %vm743, %v851, 0
    %858 = vmatpush.bf16.msra.mxu0 0
    %859 = vmatpush.bf16.msra.mxu0 0
    %860 = vmatpush.bf16.msra.mxu0 0
    %861 = vmatpush.bf16.msra.mxu0 0
    %862 = vmatpush.bf16.msra.mxu0 0
    %863 = vmatpush.bf16.msra.mxu0 0
    %864 = vmatpush.bf16.msra.mxu0 0
    %865 = vmatpush.bf16.msra.mxu0 %v856
    %866 = vmatmul.bf16.gmra.mxu0 %v853
    %v867 = vpop.f32.mrf.mxu0
    %v868 = vadd.f32 0.0, %v867
    %v869 = vpop.f32.mrf.mxu0
    %870 = vdwg.mxu0
    %v872 = vsel %vm641, %v737, 0
    %874 = vmatpush.bf16.msra.mxu0 0
    %875 = vmatpush.bf16.msra.mxu0 0
    %876 = vmatpush.bf16.msra.mxu0 0
    %877 = vmatpush.bf16.msra.mxu0 0
    %878 = vmatpush.bf16.msra.mxu0 0
    %879 = vmatpush.bf16.msra.mxu0 0
    %880 = vmatpush.bf16.msra.mxu0 0
    %881 = vmatpush.bf16.msra.mxu0 %v856
    %882 = vmatmul.bf16.gmra.mxu0 %v872
    %v883 = vpop.f32.mrf.mxu0
    %v884 = vadd.f32 0.0, %v883
    %v885 = vpop.f32.mrf.mxu0
    %886 = vdwg.mxu0
    %888 = vrot.lane.b32.xlu0 %v773, 16
    %v889 = vpop.permute.xlu0 %888
    %892 = vrot.lane.b32.xlu0 %v794, 32
    %v893 = vpop.permute.xlu0 %892
    %896 = vrot.lane.b32.xlu0 %v810, 48
    %v897 = vpop.permute.xlu0 %896
    %v899 = vsel %vm485, %v757, %v889
    %vm900 = vcmask 261120
    %v901 = vsel %vm900, %v899, %v893
    %vm902 = vcmask 392192
    %v903 = vsel %vm902, %v901, %v897
    %905 = vrot.lane.b32.xlu0 %v847, 16
    %v906 = vpop.permute.xlu0 %905
    %909 = vrot.lane.b32.xlu0 %v868, 32
    %v910 = vpop.permute.xlu0 %909
    %913 = vrot.lane.b32.xlu0 %v884, 48
    %v914 = vpop.permute.xlu0 %913
    %v916 = vsel %vm485, %v831, %v906
    %v917 = vsel %vm900, %v916, %v910
    %v918 = vsel %vm902, %v917, %v914
    %v919 = vpack.c.bf16 %v918, %v903
    %v920 = vld [vmem:[%s5] sm:$0xf]
    %v921 = vld [vmem:[%s5 + $0x4] sm:$0xf]
    %v922 = vld [vmem:[%s5 + $0x8] sm:$0xf]
    %v923 = vld [vmem:[%s5 + $0xc] sm:$0xf]
    %v924 = vld [vmem:[%s5 + $0x10] sm:$0xf]
    %v925 = vld [vmem:[%s5 + $0x14] sm:$0xf]
    %v926 = vld [vmem:[%s5 + $0x18] sm:$0xf]
    %v927 = vld [vmem:[%s5 + $0x1c] sm:$0xf]
    %v936 = vunpack.c.l.b16 %v920
    %v937 = vunpack.c.l.b16 %v921
    %v938 = vunpack.c.l.b16 %v922
    %v939 = vunpack.c.l.b16 %v923
    %v940 = vunpack.c.l.b16 %v924
    %v941 = vunpack.c.l.b16 %v925
    %v942 = vunpack.c.l.b16 %v926
    %v943 = vunpack.c.l.b16 %v927
    %v944 = vpack.c.b16 %v937, %v936
    %v945 = vpack.c.b16 %v939, %v938
    %v946 = vpack.c.b16 %v941, %v940
    %v947 = vpack.c.b16 %v943, %v942
    %v953 = vsel %vm51, %v919, 0
    %955 = vmatpush.bf16.msra.mxu0 0
    %956 = vmatpush.bf16.msra.mxu0 0
    %957 = vmatpush.bf16.msra.mxu0 0
    %958 = vmatpush.bf16.msra.mxu0 0
    %959 = vmatpush.bf16.msra.mxu0 %v947
    %960 = vmatpush.bf16.msra.mxu0 %v946
    %961 = vmatpush.bf16.msra.mxu0 %v945
    %962 = vmatpush.bf16.msra.mxu0 %v944
    %963 = vmatmul.bf16.gmra.mxu0 %v953
    %v964 = vpop.f32.mrf.mxu0
    %v965 = vadd.f32 0.0, %v964
    %v966 = vpop.f32.mrf.mxu0
    %v967 = vadd.f32 0.0, %v966
    %968 = vdwg.mxu0
    %v969 = vadd.f32 %v47, %v965
    %v970 = vadd.f32 %v48, %v967
    %v971 = vmul.f32 %v969, %v969
    %v972 = vmul.f32 %v970, %v970
    %v973 = vsel %vm51, %v971, 0.0
    %974 = vadd.xlane.f32.xlu0 %v973
    %v975 = vpop.xlane.xlu0 %974
    %v976 = vsel %vm51, %v972, 0.0
    %977 = vadd.xlane.f32.xlu0 %v976
    %v978 = vpop.xlane.xlu0 %977
    %v979 = vmul.f32 %v975, %v64
    %v980 = vmul.f32 %v978, %v64
    %v981 = vadd.f32 %v979, 1e-06
    %v982 = vadd.f32 %v980, 1e-06
    %v983 = vrsqrt.pop %v981
    %v984 = vmul.f32 %v983, %v981
    %v985 = vmul.f32 %v984, %v983
    %v986 = vmul.f32 0.5, %v985
    %v987 = vsub.f32 1.5, %v986
    %v988 = vmul.f32 %v983, %v987
    %vm989 = vweird.f32 %v981
    %vm990 = vweird.f32 %v983
    %vm991 = vmor %vm989, %vm990
    %v992 = vsel %vm991, %v983, %v988
    %v993 = vrsqrt.pop %v982
    %v994 = vmul.f32 %v993, %v982
    %v995 = vmul.f32 %v994, %v993
    %v996 = vmul.f32 0.5, %v995
    %v997 = vsub.f32 1.5, %v996
    %v998 = vmul.f32 %v993, %v997
    %vm999 = vweird.f32 %v982
    %vm1000 = vweird.f32 %v993
    %vm1001 = vmor %vm999, %vm1000
    %v1002 = vsel %vm1001, %v993, %v998
    %v1003 = vmul.f32 %v969, %v992
    %v1004 = vmul.f32 %v970, %v1002
    %v1005 = vpack.c.bf16 %v1004, %v1003
    %v1006 = vld [vmem:[%s6] sm:$0xff]
    %v1007 = vld [vmem:[%s6 + $0x8] sm:$0xff]
    %v1008 = vld [vmem:[%s6 + $0x10] sm:$0xff]
    %v1009 = vld [vmem:[%s6 + $0x18] sm:$0xff]
    %v1010 = vld [vmem:[%s6 + $0x20] sm:$0xff]
    %v1011 = vld [vmem:[%s6 + $0x28] sm:$0xff]
    %v1012 = vld [vmem:[%s6 + $0x30] sm:$0xff]
    %v1013 = vld [vmem:[%s6 + $0x38] sm:$0xff]
    %v1022 = vunpack.c.l.b16 %v1006
    %v1023 = vunpack.c.h.b16 %v1006
    %v1024 = vunpack.c.l.b16 %v1007
    %v1025 = vunpack.c.h.b16 %v1007
    %v1026 = vunpack.c.l.b16 %v1008
    %v1027 = vunpack.c.h.b16 %v1008
    %v1028 = vunpack.c.l.b16 %v1009
    %v1029 = vunpack.c.h.b16 %v1009
    %v1030 = vunpack.c.l.b16 %v1010
    %v1031 = vunpack.c.h.b16 %v1010
    %v1032 = vunpack.c.l.b16 %v1011
    %v1033 = vunpack.c.h.b16 %v1011
    %v1034 = vunpack.c.l.b16 %v1012
    %v1035 = vunpack.c.h.b16 %v1012
    %v1036 = vunpack.c.l.b16 %v1013
    %v1037 = vunpack.c.h.b16 %v1013
    %v1038 = vpack.c.b16 %v1024, %v1022
    %v1039 = vpack.c.b16 %v1025, %v1023
    %v1040 = vpack.c.b16 %v1028, %v1026
    %v1041 = vpack.c.b16 %v1029, %v1027
    %v1042 = vpack.c.b16 %v1032, %v1030
    %v1043 = vpack.c.b16 %v1033, %v1031
    %v1044 = vpack.c.b16 %v1036, %v1034
    %v1045 = vpack.c.b16 %v1037, %v1035
    %v1055 = vsel %vm51, %v1005, 0
    %1057 = vmatpush.bf16.msra.mxu0 0
    %1058 = vmatpush.bf16.msra.mxu0 0
    %1059 = vmatpush.bf16.msra.mxu0 0
    %1060 = vmatpush.bf16.msra.mxu0 0
    %1061 = vmatpush.bf16.msra.mxu0 %v1044
    %1062 = vmatpush.bf16.msra.mxu0 %v1042
    %1063 = vmatpush.bf16.msra.mxu0 %v1040
    %1064 = vmatpush.bf16.msra.mxu0 %v1038
    %1065 = vmatmul.bf16.gmra.mxu0 %v1055
    %v1066 = vpop.f32.mrf.mxu0
    %v1067 = vadd.f32 0.0, %v1066
    %v1068 = vpop.f32.mrf.mxu0
    %v1069 = vadd.f32 0.0, %v1068
    %1070 = vdwg.mxu0
    %1071 = vmatpush.bf16.msra.mxu0 0
    %1072 = vmatpush.bf16.msra.mxu0 0
    %1073 = vmatpush.bf16.msra.mxu0 0
    %1074 = vmatpush.bf16.msra.mxu0 0
    %1075 = vmatpush.bf16.msra.mxu0 %v1045
    %1076 = vmatpush.bf16.msra.mxu0 %v1043
    %1077 = vmatpush.bf16.msra.mxu0 %v1041
    %1078 = vmatpush.bf16.msra.mxu0 %v1039
    %1079 = vmatmul.bf16.gmra.mxu0 %v1055
    %v1080 = vpop.f32.mrf.mxu0
    %v1081 = vadd.f32 0.0, %v1080
    %v1082 = vpop.f32.mrf.mxu0
    %v1083 = vadd.f32 0.0, %v1082
    %1084 = vdwg.mxu0
    %v1085 = vxor.u32 %v1067, 2147483648
    %v1086 = vxor.u32 %v1069, 2147483648
    %v1087 = vmul.f32 %v1085, 1.442695
    %v1088 = vpow.pop %v1087
    %v1089 = vmul.f32 %v1086, 1.442695
    %v1090 = vpow.pop %v1089
    %v1091 = vadd.f32 %v1088, 1.0
    %v1092 = vadd.f32 %v1090, 1.0
    %v1093 = vrcp.pop %v1091
    %v1094 = vmul.f32 %v1091, %v1093
    %v1095 = vsub.f32 1.0, %v1094
    %v1096 = vmul.f32 %v1093, %v1095
    %v1097 = vadd.f32 %v1093, %v1096
    %vm1098 = vweird.f32 %v1091
    %vm1099 = vweird.f32 %v1093
    %vm1100 = vmor %vm1098, %vm1099
    %v1101 = vsel %vm1100, %v1093, %v1097
    %v1102 = vand.u32 2147483647, %v1091
    %vm1103 = vcmp.eq.f32.partialorder %v1102, 8.507059e+37
    %v1104 = vand.u32 %v1091, 2147483648
    %v1105 = vor.u32 1.1754944e-38, %v1104
    %v1106 = vsel %vm1103, %v1105, %v1101
    %v1107 = vmul.f32 1.0, %v1106
    %v1108 = vrcp.pop %v1092
    %v1109 = vmul.f32 %v1092, %v1108
    %v1110 = vsub.f32 1.0, %v1109
    %v1111 = vmul.f32 %v1108, %v1110
    %v1112 = vadd.f32 %v1108, %v1111
    %vm1113 = vweird.f32 %v1092
    %vm1114 = vweird.f32 %v1108
    %vm1115 = vmor %vm1113, %vm1114
    %v1116 = vsel %vm1115, %v1108, %v1112
    %v1117 = vand.u32 2147483647, %v1092
    %vm1118 = vcmp.eq.f32.partialorder %v1117, 8.507059e+37
    %v1119 = vand.u32 %v1092, 2147483648
    %v1120 = vor.u32 1.1754944e-38, %v1119
    %v1121 = vsel %vm1118, %v1120, %v1116
    %v1122 = vmul.f32 1.0, %v1121
    %v1123 = vmul.f32 %v1067, %v1107
    %v1124 = vmul.f32 %v1069, %v1122
    %v1125 = vmul.f32 %v1123, %v1081
    %v1126 = vmul.f32 %v1124, %v1083
    %v1127 = vpack.c.bf16 %v1126, %v1125
    %v1128 = vld [vmem:[%s7] sm:$0xf]
    %v1129 = vld [vmem:[%s7 + $0x4] sm:$0xf]
    %v1130 = vld [vmem:[%s7 + $0x8] sm:$0xf]
    %v1131 = vld [vmem:[%s7 + $0xc] sm:$0xf]
    %v1132 = vld [vmem:[%s7 + $0x10] sm:$0xf]
    %v1133 = vld [vmem:[%s7 + $0x14] sm:$0xf]
    %v1134 = vld [vmem:[%s7 + $0x18] sm:$0xf]
    %v1135 = vld [vmem:[%s7 + $0x1c] sm:$0xf]
    %v1136 = vld [vmem:[%s7 + $0x20] sm:$0xf]
    %v1137 = vld [vmem:[%s7 + $0x24] sm:$0xf]
    %v1138 = vld [vmem:[%s7 + $0x28] sm:$0xf]
    %v1139 = vld [vmem:[%s7 + $0x2c] sm:$0xf]
    %v1140 = vld [vmem:[%s7 + $0x30] sm:$0xf]
    %v1141 = vld [vmem:[%s7 + $0x34] sm:$0xf]
    %v1142 = vld [vmem:[%s7 + $0x38] sm:$0xf]
    %v1143 = vld [vmem:[%s7 + $0x3c] sm:$0xf]
    %v1160 = vunpack.c.l.b16 %v1128
    %v1161 = vunpack.c.l.b16 %v1129
    %v1162 = vunpack.c.l.b16 %v1130
    %v1163 = vunpack.c.l.b16 %v1131
    %v1164 = vunpack.c.l.b16 %v1132
    %v1165 = vunpack.c.l.b16 %v1133
    %v1166 = vunpack.c.l.b16 %v1134
    %v1167 = vunpack.c.l.b16 %v1135
    %v1168 = vunpack.c.l.b16 %v1136
    %v1169 = vunpack.c.l.b16 %v1137
    %v1170 = vunpack.c.l.b16 %v1138
    %v1171 = vunpack.c.l.b16 %v1139
    %v1172 = vunpack.c.l.b16 %v1140
    %v1173 = vunpack.c.l.b16 %v1141
    %v1174 = vunpack.c.l.b16 %v1142
    %v1175 = vunpack.c.l.b16 %v1143
    %v1176 = vpack.c.b16 %v1161, %v1160
    %v1177 = vpack.c.b16 %v1163, %v1162
    %v1178 = vpack.c.b16 %v1165, %v1164
    %v1179 = vpack.c.b16 %v1167, %v1166
    %v1180 = vpack.c.b16 %v1169, %v1168
    %v1181 = vpack.c.b16 %v1171, %v1170
    %v1182 = vpack.c.b16 %v1173, %v1172
    %v1183 = vpack.c.b16 %v1175, %v1174
    %1192 = vmatpush.bf16.msra.mxu0 %v1183
    %1193 = vmatpush.bf16.msra.mxu0 %v1182
    %1194 = vmatpush.bf16.msra.mxu0 %v1181
    %1195 = vmatpush.bf16.msra.mxu0 %v1180
    %1196 = vmatpush.bf16.msra.mxu0 %v1179
    %1197 = vmatpush.bf16.msra.mxu0 %v1178
    %1198 = vmatpush.bf16.msra.mxu0 %v1177
    %1199 = vmatpush.bf16.msra.mxu0 %v1176
    %1200 = vmatmul.bf16.gmra.mxu0 %v1127
    %v1201 = vpop.f32.mrf.mxu0
    %v1202 = vadd.f32 0.0, %v1201
    %v1203 = vpop.f32.mrf.mxu0
    %v1204 = vadd.f32 0.0, %v1203
    %1205 = vdwg.mxu0
    %v1206 = vadd.f32 %v969, %v1202
    %v1207 = vadd.f32 %v970, %v1204
    %1208 = vst.msk [vmem:[#allocation5] sm:$0xff] %vm51, %v1206
    %1209 = vst.msk [vmem:[#allocation5 + $0x8] sm:$0xff] %vm51, %v1207
    // Predicated region
    $region38: #{llama_decoder_layer.1} parent=1 // pred_check
      _
    $region39: #{llama_decoder_layer.1} parent=1 // pred_check_branch
      %1211 = sbr.rel (0) target = $region41
    $region40: #{llama_decoder_layer.1} parent=1 // pred_region
      %1213 = vsyncadd [#allocation4], 0
      %s1214 = sshll.u32 [#allocation5], 4
      %s1215 = int_to_ptr.vmem [resolvable:$true] %s1214
      %s1216 = sshll.u32 %s8, 4
      %s1217 = int_to_ptr.hbm [resolvable:$true] %s1216
      %1222 = dma.vmem_to_hbm [thread:$0]  %s1215, 256, %s1217, [#allocation4], 128, 128, 8
    $region41: #{llama_decoder_layer.1} parent=1 // pred_fallthru
      _
    // Predicated region
    $region42: #{llama_decoder_layer.1} parent=1 // pred_check
      _
    $region43: #{llama_decoder_layer.1} parent=1 // pred_check_branch
      %1224 = sbr.rel (0) target = $region45
    $region44: #{llama_decoder_layer.1} parent=1 // pred_region
      %1226 = dma.done [#allocation4], 256
    $region45: #{llama_decoder_layer.1} parent=1 // pred_fallthru
      _
    %1227 = vsyncpa [#allocation3], 1
    %1228 = vsyncpa [#allocation4], 1

</llo_original>
